<compile_context>
chip_gen: v6e
topology: v6e:2x2x1
jax: 0.10.0
libtpu: 0.0.40
codegen_flags: <defaults>
</compile_context>

<pallas_src>
import functools

import jax
import jax.numpy as jnp
from jax.experimental import pallas as pl
from jax.experimental.pallas import tpu as pltpu


def attention_kernel(enc_ref, dec_ref,
                     w_enc_ref, w_dec_ref,
                     b_att_ref, w_full_ref,
                     awe_ref, alpha_ref,
                     *, p_actual, approx_softmax):
    # Per-grid-step blocks (one tile of TB batch elements):
    #   enc_ref    : (TB, P_pad, E)  [matmul dtype]   dec_ref : (TB, D) [matmul dtype]
    #   w_enc_ref  : (E, A)          w_dec_ref : (D, A)        [matmul dtype]
    #   b_att_ref  : (1, A) f32  (= b_enc + b_dec, folded)
    #   w_full_ref : (1, A) f32  (full_att weight row; b_full dropped -- softmax shift inv.)
    #   awe_ref    : (TB, E) f32     alpha_ref : (TB, P_pad) f32
    tb, p_pad, e_dim = enc_ref.shape
    a_dim = w_enc_ref.shape[1]

    # att1 = encoder_att(encoder_out): one big MXU matmul with M = TB*P_pad.
    # P_pad % 8 == 0 (wrapper guarantees it), so this reshape is a free layout view.
    enc_flat = enc_ref[...].reshape(tb * p_pad, e_dim)
    att1 = jnp.dot(enc_flat, w_enc_ref[...],
                   preferred_element_type=jnp.float32)            # (TB*P_pad, A) f32 acc
    att1 = att1.reshape(tb, p_pad, a_dim)

    # att2 = decoder_att(decoder_hidden) with the combined (b_enc + b_dec) bias.
    att2 = jnp.dot(dec_ref[...], w_dec_ref[...],
                   preferred_element_type=jnp.float32) + b_att_ref[...]   # (TB, A) f32

    # relu(att1 + att2.unsqueeze(1)) -- all elementwise math in f32 (v5e-friendly).
    h = jnp.maximum(att1 + att2[:, None, :], 0.0)                  # (TB, P_pad, A)

    # full_att as a VPU multiply + lane-axis reduction (avoids an N=1 MXU matmul).
    scores = jnp.sum(h * w_full_ref[...], axis=-1)                 # (TB, P_pad)

    # Mask padded pixel columns out of the softmax (only present when P % 8 != 0).
    if p_actual != p_pad:
        pix = jax.lax.broadcasted_iota(jnp.int32, (tb, p_pad), 1)
        scores = jnp.where(pix < p_actual, scores, jnp.float32(-1e30))

    # Softmax over the pixel axis (P is the lane axis -> cheap row reductions).
    m = jnp.max(scores, axis=-1, keepdims=True)                    # (TB, 1)
    ex = jnp.exp(scores - m)
    denom = jnp.sum(ex, axis=-1, keepdims=True)                    # (TB, 1)
    alpha = ex * pl.reciprocal(denom, approx=approx_softmax)       # (TB, P_pad)

    # attention_weighted_encoding on the VPU/XLU: re-read enc_ref here (cheap VMEM read,
    # shortens the live range of the largest value), upcast to f32, multiply by alpha and
    # sublane-reduce over P.  Keeps the MXU stream free of TB near-empty M=1 matmuls.
    enc_f32 = enc_ref[...].astype(jnp.float32)                     # (TB, P_pad, E)
    awe = jnp.sum(enc_f32 * alpha[:, :, None], axis=1)             # (TB, E)

    awe_ref[...] = awe.astype(awe_ref.dtype)
    alpha_ref[...] = alpha.astype(alpha_ref.dtype)


def _vmem_estimate(tb, p_pad, e, d, a, mm_isz):
    """Rough per-kernel VMEM footprint (bytes): double-buffered batch tiles, resident
    weights (counted at 2 buffers to stay conservative), outputs, and the dominant f32
    intermediates (att1/h and the f32 upcast of the encoder tile for the awe reduce)."""
    enc_tiles = 2 * tb * p_pad * e * mm_isz
    dec_tiles = 2 * tb * d * mm_isz
    weights = 2 * (e * a + d * a) * mm_isz + 2 * 2 * a * 4
    outputs = 2 * (tb * e * 4 + tb * p_pad * 4)
    interm = 2 * tb * p_pad * a * 4 + tb * p_pad * e * 4 + 8 * tb * a * 4
    return enc_tiles + dec_tiles + weights + outputs + interm


def _choose_batch_tile(B, P_pad, E, D, A, mm_isz,
                       vmem_budget_bytes=48 * 1024 * 1024, min_tiles=2):
    """Dimension/dtype-aware batch-tile choice.

    Hard constraints: TB divides B and is sublane-legal (TB % 8 == 0 or TB == B).
    Preferences, in order: the per-step VMEM estimate fits the budget (sized for v7x's
    64 MiB), the grid has >= `min_tiles` steps (so v7x's two TensorCores both get work),
    then the largest TB (amortizes the ~0.35 us per-grid-step overhead).
    """
    candidates = [tb for tb in range(1, B + 1)
                  if B % tb == 0 and (tb % 8 == 0 or tb == B)]

    def score(tb):
        fits = _vmem_estimate(tb, P_pad, E, D, A, mm_isz) <= vmem_budget_bytes
        multi = (B // tb) >= min_tiles
        return (fits, multi, tb)

    return max(candidates, key=score)


def _make_call(TB, P_pad, B, P, E, D, A, out_dtype, vmem_limit_bytes,
               approx_softmax, weight_pipeline_mode):
    wkw = {} if weight_pipeline_mode is None else {"pipeline_mode": weight_pipeline_mode}
    kernel = functools.partial(attention_kernel,
                               p_actual=P, approx_softmax=approx_softmax)
    return pl.pallas_call(
        kernel,
        grid=(B // TB,),
        in_specs=[
            pl.BlockSpec((TB, P_pad, E), lambda i: (i, 0, 0)),        # encoder_out tile
            pl.BlockSpec((TB, D), lambda i: (i, 0)),                  # decoder_hidden tile
            pl.BlockSpec((E, A), lambda i: (0, 0), **wkw),            # W_enc^T (resident)
            pl.BlockSpec((D, A), lambda i: (0, 0), **wkw),            # W_dec^T (resident)
            pl.BlockSpec((1, A), lambda i: (0, 0), **wkw),            # b_enc + b_dec
            pl.BlockSpec((1, A), lambda i: (0, 0), **wkw),            # W_full row
        ],
        out_specs=[
            pl.BlockSpec((TB, E), lambda i: (i, 0)),                  # awe
            pl.BlockSpec((TB, P_pad), lambda i: (i, 0)),              # alpha (lane-dense)
        ],
        out_shape=[
            jax.ShapeDtypeStruct((B, E), out_dtype),
            jax.ShapeDtypeStruct((B, P_pad), jnp.float32),
        ],
        compiler_params=pltpu.CompilerParams(
            dimension_semantics=("parallel",),          # batch tiles shard across TCs
            vmem_limit_bytes=vmem_limit_bytes),
    )


def attention_forward(encoder_out, decoder_hidden, params, *,
                      batch_tile=None, matmul_dtype=jnp.float32,
                      approx_softmax=False):
    """Returns (attention_weighted_encoding (B, E) f32, alpha (B, P) f32).

    matmul_dtype=jnp.bfloat16 casts the matmul operands only (encoder_out,
    decoder_hidden, W_enc, W_dec); accumulation and all softmax/awe math stay f32.
    """
    B, P, E = encoder_out.shape
    D = decoder_hidden.shape[1]
    A = params["w_enc"].shape[0]

    # Pad the pixel dim to a multiple of 8 so the in-kernel (TB*P, E) flatten is a free
    # layout view (e.g. P=196 -> 200 at production shapes).  Padded pixels are masked
    # out of the softmax and sliced off alpha below.
    P_pad = ((P + 7) // 8) * 8
    enc = encoder_out
    if P_pad != P:
        enc = jnp.pad(enc, ((0, 0), (0, P_pad - P), (0, 0)))

    mm_isz = jnp.dtype(matmul_dtype).itemsize
    if batch_tile is None:
        TB = _choose_batch_tile(B, P_pad, E, D, A, mm_isz)
    else:
        TB = batch_tile
        assert B % TB == 0 and (TB % 8 == 0 or TB == B), "batch tile must be sublane-legal"

    # Matmul operands in matmul_dtype; biases / full_att row stay f32 (post-matmul math).
    enc_in = enc.astype(matmul_dtype)
    dec_in = decoder_hidden.astype(matmul_dtype)
    w_enc_t = params["w_enc"].T.astype(matmul_dtype)            # (E, A)
    w_dec_t = params["w_dec"].T.astype(matmul_dtype)            # (D, A)
    b_att = (params["b_enc"] + params["b_dec"]).reshape(1, A).astype(jnp.float32)
    w_full_row = params["w_full"].reshape(1, A).astype(jnp.float32)
    # params["b_full"] intentionally not passed: softmax(att + c) == softmax(att).

    est = _vmem_estimate(TB, P_pad, E, D, A, mm_isz)
    vmem_limit = int(min(128 * 1024 * 1024, max(est * 3 // 2 + (4 << 20), 32 << 20)))

    args = (enc_in, dec_in, w_enc_t, w_dec_t, b_att, w_full_row)
    common = (TB, P_pad, B, P, E, D, A, jnp.float32, vmem_limit, approx_softmax)
    try:
        # Single-buffer the grid-invariant weights (saves a duplicate VMEM buffer).
        awe, alpha = _make_call(*common, weight_pipeline_mode=pl.Buffered(1))(*args)
    except Exception:
        # Fallback: this jax/Mosaic version does not accept pl.Buffered(1) here;
        # use the default double-buffered resident weights (correctness identical).
        awe, alpha = _make_call(*common, weight_pipeline_mode=None)(*args)

    if P_pad != P:
        alpha = alpha[:, :P]
    return awe, alpha


def attention_ref(encoder_out, decoder_hidden, params):
    """Pure-JAX reference mirroring the PyTorch forward exactly (incl. b_full)."""
    att1 = encoder_out @ params["w_enc"].T + params["b_enc"]                 # (B, P, A)
    att2 = decoder_hidden @ params["w_dec"].T + params["b_dec"]              # (B, A)
    att = (jnp.maximum(att1 + att2[:, None, :], 0.0) @ params["w_full"].T
           + params["b_full"])[..., 0]                                       # (B, P)
    alpha = jax.nn.softmax(att, axis=1)
    awe = (encoder_out * alpha[:, :, None]).sum(axis=1)                      # (B, E)
    return awe, alpha


def init_params(key, encoder_dim, decoder_dim, attention_dim):
    k1, k2, k3, k4, k5, k6 = jax.random.split(key, 6)

    def lin(kw, kb, in_f, out_f):
        bound = 1.0 / jnp.sqrt(in_f)
        w = jax.random.uniform(kw, (out_f, in_f), jnp.float32, -bound, bound)
        b = jax.random.uniform(kb, (out_f,), jnp.float32, -bound, bound)
        return w, b

    w_enc, b_enc = lin(k1, k2, encoder_dim, attention_dim)
    w_dec, b_dec = lin(k3, k4, decoder_dim, attention_dim)
    w_full, b_full = lin(k5, k6, attention_dim, 1)
    return {"w_enc": w_enc, "b_enc": b_enc,
            "w_dec": w_dec, "b_dec": b_dec,
            "w_full": w_full, "b_full": b_full}


if __name__ == "__main__":
    # Small, deterministic example shapes. B=16 -> TB=8 -> grid of 2 batch tiles.
    B, P = 16, 16                # batch, num_pixels
    E, D, A = 32, 24, 40         # encoder_dim, decoder_dim, attention_dim

    key = jax.random.PRNGKey(0)
    kp, ke, kd = jax.random.split(key, 3)

    params = init_params(kp, E, D, A)
    encoder_out = jax.random.normal(ke, (B, P, E), jnp.float32)
    decoder_hidden = jax.random.normal(kd, (B, D), jnp.float32)

    awe_r, alpha_r = attention_ref(encoder_out, decoder_hidden, params)

    # f32 path: tight correctness check (exact softmax reciprocal).
    awe, alpha = attention_forward(encoder_out, decoder_hidden, params)
    jax.block_until_ready((awe, alpha))
    assert awe.shape == (B, E) and alpha.shape == (B, P)
    assert jnp.allclose(awe, awe_r, atol=1e-5, rtol=1e-5)
    assert jnp.allclose(alpha, alpha_r, atol=1e-5, rtol=1e-5)

    # Production-style path: bf16 matmul operands (f32 accumulation + f32 softmax math)
    # and the approximate EUP reciprocal; looser tolerance due to bf16 operand rounding.
    awe_bf, alpha_bf = attention_forward(
        encoder_out, decoder_hidden, params,
        matmul_dtype=jnp.bfloat16, approx_softmax=True)
    jax.block_until_ready((awe_bf, alpha_bf))
    assert jnp.allclose(awe_bf, awe_r, atol=5e-2, rtol=5e-2)
    assert jnp.allclose(alpha_bf, alpha_r, atol=5e-2, rtol=5e-2)

    print("KERNEL_OK")
</pallas_src>

<mosaic_0001>
module attributes {stable_mosaic.version = 11 : i64} {
  func.func @attention_kernel(%arg0: i32, %arg1: memref<8x16x32xf32, #tpu.memory_space<vmem>>, %arg2: memref<8x24xf32, #tpu.memory_space<vmem>>, %arg3: memref<32x40xf32, #tpu.memory_space<vmem>>, %arg4: memref<24x40xf32, #tpu.memory_space<vmem>>, %arg5: memref<1x40xf32, #tpu.memory_space<vmem>>, %arg6: memref<1x40xf32, #tpu.memory_space<vmem>>, %arg7: memref<8x32xf32, #tpu.memory_space<vmem>>, %arg8: memref<8x16xf32, #tpu.memory_space<vmem>>) attributes {dimension_semantics = [#tpu.dimension_semantics<parallel>], iteration_bounds = array<i64: 2>, scalar_prefetch = 0 : i64, scratch_operands = 0 : i64, tpu.core_type = #tpu.core_type<tc>, window_params = [{transform_indices = @transform_0, window_bounds = array<i64: 8, 16, 32>}, {transform_indices = @transform_1, window_bounds = array<i64: 8, 24>}, {pipeline_mode = #tpu.pipeline_mode<synchronous>, transform_indices = @transform_2, window_bounds = array<i64: 32, 40>}, {pipeline_mode = #tpu.pipeline_mode<synchronous>, transform_indices = @transform_3, window_bounds = array<i64: 24, 40>}, {pipeline_mode = #tpu.pipeline_mode<synchronous>, transform_indices = @transform_4, window_bounds = array<i64: 1, 40>}, {pipeline_mode = #tpu.pipeline_mode<synchronous>, transform_indices = @transform_5, window_bounds = array<i64: 1, 40>}, {transform_indices = @transform_6, window_bounds = array<i64: 8, 32>}, {transform_indices = @transform_7, window_bounds = array<i64: 8, 16>}]} {
    %c0 = arith.constant 0 : index
    %c0_0 = arith.constant 0 : index
    %c0_1 = arith.constant 0 : index
    %0 = vector.load %arg1[%c0, %c0_0, %c0_1] : memref<8x16x32xf32, #tpu.memory_space<vmem>>, vector<8x16x32xf32>
    %1 = vector.shape_cast %0 : vector<8x16x32xf32> to vector<128x32xf32>
    %c0_2 = arith.constant 0 : index
    %c0_3 = arith.constant 0 : index
    %2 = vector.load %arg3[%c0_2, %c0_3] : memref<32x40xf32, #tpu.memory_space<vmem>>, vector<32x40xf32>
    %cst = arith.constant dense<0.000000e+00> : vector<128x40xf32>
    %3 = tpu.matmul %1, %2, %cst {dimension_numbers = #tpu.dot_dimension_numbers<[1], [0], [0], [1], [0, 0, 1, 1], [], []>} : vector<128x32xf32>, vector<32x40xf32>, vector<128x40xf32> -> vector<128x40xf32>
    %4 = vector.shape_cast %3 : vector<128x40xf32> to vector<8x16x40xf32>
    %c0_4 = arith.constant 0 : index
    %c0_5 = arith.constant 0 : index
    %5 = vector.load %arg2[%c0_4, %c0_5] : memref<8x24xf32, #tpu.memory_space<vmem>>, vector<8x24xf32>
    %c0_6 = arith.constant 0 : index
    %c0_7 = arith.constant 0 : index
    %6 = vector.load %arg4[%c0_6, %c0_7] : memref<24x40xf32, #tpu.memory_space<vmem>>, vector<24x40xf32>
    %cst_8 = arith.constant dense<0.000000e+00> : vector<8x40xf32>
    %7 = tpu.matmul %5, %6, %cst_8 {dimension_numbers = #tpu.dot_dimension_numbers<[1], [0], [0], [1], [0, 0, 1, 1], [], []>} : vector<8x24xf32>, vector<24x40xf32>, vector<8x40xf32> -> vector<8x40xf32>
    %c0_9 = arith.constant 0 : index
    %c0_10 = arith.constant 0 : index
    %8 = vector.load %arg5[%c0_9, %c0_10] : memref<1x40xf32, #tpu.memory_space<vmem>>, vector<1x40xf32>
    %9 = vector.broadcast %8 : vector<1x40xf32> to vector<8x40xf32>
    %10 = arith.addf %7, %9 : vector<8x40xf32>
    %11 = vector.shape_cast %10 : vector<8x40xf32> to vector<8x1x40xf32>
    %12 = vector.broadcast %11 : vector<8x1x40xf32> to vector<8x16x40xf32>
    %13 = arith.addf %4, %12 : vector<8x16x40xf32>
    %cst_11 = arith.constant 0.000000e+00 : f32
    %14 = vector.broadcast %cst_11 : f32 to vector<8x16x40xf32>
    %15 = arith.maximumf %13, %14 : vector<8x16x40xf32>
    %c0_12 = arith.constant 0 : index
    %c0_13 = arith.constant 0 : index
    %16 = vector.load %arg6[%c0_12, %c0_13] : memref<1x40xf32, #tpu.memory_space<vmem>>, vector<1x40xf32>
    %17 = vector.shape_cast %16 : vector<1x40xf32> to vector<1x1x40xf32>
    %18 = vector.broadcast %17 : vector<1x1x40xf32> to vector<8x16x40xf32>
    %19 = arith.mulf %15, %18 : vector<8x16x40xf32>
    %cst_14 = arith.constant dense<0.000000e+00> : vector<8x16xf32>
    %20 = vector.multi_reduction <add>, %19, %cst_14 [2] : vector<8x16x40xf32> to vector<8x16xf32>
    %cst_15 = arith.constant dense<0xFF800000> : vector<8xf32>
    %21 = vector.multi_reduction <maximumf>, %20, %cst_15 [1] : vector<8x16xf32> to vector<8xf32>
    %22 = vector.shape_cast %21 : vector<8xf32> to vector<8x1xf32>
    %23 = vector.broadcast %22 : vector<8x1xf32> to vector<8x16xf32>
    %24 = arith.subf %20, %23 : vector<8x16xf32>
    %25 = math.exp %24 : vector<8x16xf32>
    %cst_16 = arith.constant dense<0.000000e+00> : vector<8xf32>
    %26 = vector.multi_reduction <add>, %25, %cst_16 [1] : vector<8x16xf32> to vector<8xf32>
    %27 = vector.shape_cast %26 : vector<8xf32> to vector<8x1xf32>
    %28 = tpu.reciprocal %27 : vector<8x1xf32> -> vector<8x1xf32>
    %29 = vector.broadcast %28 : vector<8x1xf32> to vector<8x16xf32>
    %30 = arith.mulf %25, %29 : vector<8x16xf32>
    %c0_17 = arith.constant 0 : index
    %c0_18 = arith.constant 0 : index
    %c0_19 = arith.constant 0 : index
    %31 = vector.load %arg1[%c0_17, %c0_18, %c0_19] : memref<8x16x32xf32, #tpu.memory_space<vmem>>, vector<8x16x32xf32>
    %32 = vector.shape_cast %30 : vector<8x16xf32> to vector<8x16x1xf32>
    %33 = vector.broadcast %32 : vector<8x16x1xf32> to vector<8x16x32xf32>
    %34 = arith.mulf %31, %33 : vector<8x16x32xf32>
    %cst_20 = arith.constant dense<0.000000e+00> : vector<8x32xf32>
    %35 = vector.multi_reduction <add>, %34, %cst_20 [1] : vector<8x16x32xf32> to vector<8x32xf32>
    %c0_21 = arith.constant 0 : index
    %c0_22 = arith.constant 0 : index
    %36 = vector.load %arg7[%c0_21, %c0_22] : memref<8x32xf32, #tpu.memory_space<vmem>>, vector<8x32xf32>
    tpu.vector_store %arg7[%c0_21, %c0_22], %35 {strides = array<i32>} : memref<8x32xf32, #tpu.memory_space<vmem>>, vector<8x32xf32>,
    %c0_23 = arith.constant 0 : index
    %c0_24 = arith.constant 0 : index
    %37 = vector.load %arg8[%c0_23, %c0_24] : memref<8x16xf32, #tpu.memory_space<vmem>>, vector<8x16xf32>
    tpu.vector_store %arg8[%c0_23, %c0_24], %30 {strides = array<i32>} : memref<8x16xf32, #tpu.memory_space<vmem>>, vector<8x16xf32>,
    return
  }
  func.func @transform_0(%arg0: i32) -> (i32, i32, i32) {
    %c0_i32 = arith.constant 0 : i32
    %c0_i32_0 = arith.constant 0 : i32
    %c0_i32_1 = arith.constant 0 : i32
    return %arg0, %c0_i32, %c0_i32_0 : i32, i32, i32
  }
  func.func @transform_1(%arg0: i32) -> (i32, i32) {
    %c0_i32 = arith.constant 0 : i32
    %c0_i32_0 = arith.constant 0 : i32
    return %arg0, %c0_i32 : i32, i32
  }
  func.func @transform_2(%arg0: i32) -> (i32, i32) {
    %c0_i32 = arith.constant 0 : i32
    %c0_i32_0 = arith.constant 0 : i32
    %c0_i32_1 = arith.constant 0 : i32
    return %c0_i32, %c0_i32_0 : i32, i32
  }
  func.func @transform_3(%arg0: i32) -> (i32, i32) {
    %c0_i32 = arith.constant 0 : i32
    %c0_i32_0 = arith.constant 0 : i32
    %c0_i32_1 = arith.constant 0 : i32
    return %c0_i32, %c0_i32_0 : i32, i32
  }
  func.func @transform_4(%arg0: i32) -> (i32, i32) {
    %c0_i32 = arith.constant 0 : i32
    %c0_i32_0 = arith.constant 0 : i32
    %c0_i32_1 = arith.constant 0 : i32
    return %c0_i32, %c0_i32_0 : i32, i32
  }
  func.func @transform_5(%arg0: i32) -> (i32, i32) {
    %c0_i32 = arith.constant 0 : i32
    %c0_i32_0 = arith.constant 0 : i32
    %c0_i32_1 = arith.constant 0 : i32
    return %c0_i32, %c0_i32_0 : i32, i32
  }
  func.func @transform_6(%arg0: i32) -> (i32, i32) {
    %c0_i32 = arith.constant 0 : i32
    %c0_i32_0 = arith.constant 0 : i32
    return %arg0, %c0_i32 : i32, i32
  }
  func.func @transform_7(%arg0: i32) -> (i32, i32) {
    %c0_i32 = arith.constant 0 : i32
    %c0_i32_0 = arith.constant 0 : i32
    return %arg0, %c0_i32 : i32, i32
  }
}

module attributes {stable_mosaic.version = 11 : i64} {
  func.func @attention_kernel(%arg0: i32, %arg1: memref<8x16x32xf32, #tpu.memory_space<vmem>>, %arg2: memref<8x24xf32, #tpu.memory_space<vmem>>, %arg3: memref<32x40xf32, #tpu.memory_space<vmem>>, %arg4: memref<24x40xf32, #tpu.memory_space<vmem>>, %arg5: memref<1x40xf32, #tpu.memory_space<vmem>>, %arg6: memref<1x40xf32, #tpu.memory_space<vmem>>, %arg7: memref<8x32xf32, #tpu.memory_space<vmem>>, %arg8: memref<8x16xf32, #tpu.memory_space<vmem>>) attributes {dimension_semantics = [#tpu.dimension_semantics<parallel>], iteration_bounds = array<i64: 2>, scalar_prefetch = 0 : i64, scratch_operands = 0 : i64, tpu.core_type = #tpu.core_type<tc>, window_params = [{transform_indices = @transform_0, window_bounds = array<i64: 8, 16, 32>}, {transform_indices = @transform_1, window_bounds = array<i64: 8, 24>}, {pipeline_mode = #tpu.pipeline_mode<synchronous>, transform_indices = @transform_2, window_bounds = array<i64: 32, 40>}, {pipeline_mode = #tpu.pipeline_mode<synchronous>, transform_indices = @transform_3, window_bounds = array<i64: 24, 40>}, {pipeline_mode = #tpu.pipeline_mode<synchronous>, transform_indices = @transform_4, window_bounds = array<i64: 1, 40>}, {pipeline_mode = #tpu.pipeline_mode<synchronous>, transform_indices = @transform_5, window_bounds = array<i64: 1, 40>}, {transform_indices = @transform_6, window_bounds = array<i64: 8, 32>}, {transform_indices = @transform_7, window_bounds = array<i64: 8, 16>}]} {
    %c0 = arith.constant 0 : index
    %c0_0 = arith.constant 0 : index
    %c0_1 = arith.constant 0 : index
    %0 = vector.load %arg1[%c0, %c0_0, %c0_1] : memref<8x16x32xf32, #tpu.memory_space<vmem>>, vector<8x16x32xf32>
    %1 = vector.shape_cast %0 : vector<8x16x32xf32> to vector<128x32xf32>
    %c0_2 = arith.constant 0 : index
    %c0_3 = arith.constant 0 : index
    %2 = vector.load %arg3[%c0_2, %c0_3] : memref<32x40xf32, #tpu.memory_space<vmem>>, vector<32x40xf32>
    %cst = arith.constant dense<0.000000e+00> : vector<128x40xf32>
    %3 = tpu.matmul %1, %2, %cst {dimension_numbers = #tpu.dot_dimension_numbers<[1], [0], [0], [1], [0, 0, 1, 1], [], []>} : vector<128x32xf32>, vector<32x40xf32>, vector<128x40xf32> -> vector<128x40xf32>
    %4 = vector.shape_cast %3 : vector<128x40xf32> to vector<8x16x40xf32>
    %c0_4 = arith.constant 0 : index
    %c0_5 = arith.constant 0 : index
    %5 = vector.load %arg2[%c0_4, %c0_5] : memref<8x24xf32, #tpu.memory_space<vmem>>, vector<8x24xf32>
    %c0_6 = arith.constant 0 : index
    %c0_7 = arith.constant 0 : index
    %6 = vector.load %arg4[%c0_6, %c0_7] : memref<24x40xf32, #tpu.memory_space<vmem>>, vector<24x40xf32>
    %cst_8 = arith.constant dense<0.000000e+00> : vector<8x40xf32>
    %7 = tpu.matmul %5, %6, %cst_8 {dimension_numbers = #tpu.dot_dimension_numbers<[1], [0], [0], [1], [0, 0, 1, 1], [], []>} : vector<8x24xf32>, vector<24x40xf32>, vector<8x40xf32> -> vector<8x40xf32>
    %c0_9 = arith.constant 0 : index
    %c0_10 = arith.constant 0 : index
    %8 = vector.load %arg5[%c0_9, %c0_10] : memref<1x40xf32, #tpu.memory_space<vmem>>, vector<1x40xf32>
    %9 = vector.broadcast %8 : vector<1x40xf32> to vector<8x40xf32>
    %10 = arith.addf %7, %9 : vector<8x40xf32>
    %11 = vector.shape_cast %10 : vector<8x40xf32> to vector<8x1x40xf32>
    %12 = vector.broadcast %11 : vector<8x1x40xf32> to vector<8x16x40xf32>
    %13 = arith.addf %4, %12 : vector<8x16x40xf32>
    %cst_11 = arith.constant 0.000000e+00 : f32
    %14 = vector.broadcast %cst_11 : f32 to vector<8x16x40xf32>
    %15 = arith.maximumf %13, %14 : vector<8x16x40xf32>
    %c0_12 = arith.constant 0 : index
    %c0_13 = arith.constant 0 : index
    %16 = vector.load %arg6[%c0_12, %c0_13] : memref<1x40xf32, #tpu.memory_space<vmem>>, vector<1x40xf32>
    %17 = vector.shape_cast %16 : vector<1x40xf32> to vector<1x1x40xf32>
    %18 = vector.broadcast %17 : vector<1x1x40xf32> to vector<8x16x40xf32>
    %19 = arith.mulf %15, %18 : vector<8x16x40xf32>
    %cst_14 = arith.constant dense<0.000000e+00> : vector<8x16xf32>
    %20 = vector.multi_reduction <add>, %19, %cst_14 [2] : vector<8x16x40xf32> to vector<8x16xf32>
    %cst_15 = arith.constant dense<0xFF800000> : vector<8xf32>
    %21 = vector.multi_reduction <maximumf>, %20, %cst_15 [1] : vector<8x16xf32> to vector<8xf32>
    %22 = vector.shape_cast %21 : vector<8xf32> to vector<8x1xf32>
    %23 = vector.broadcast %22 : vector<8x1xf32> to vector<8x16xf32>
    %24 = arith.subf %20, %23 : vector<8x16xf32>
    %25 = math.exp %24 : vector<8x16xf32>
    %cst_16 = arith.constant dense<0.000000e+00> : vector<8xf32>
    %26 = vector.multi_reduction <add>, %25, %cst_16 [1] : vector<8x16xf32> to vector<8xf32>
    %27 = vector.shape_cast %26 : vector<8xf32> to vector<8x1xf32>
    %28 = tpu.reciprocal %27 : vector<8x1xf32> -> vector<8x1xf32>
    %29 = vector.broadcast %28 : vector<8x1xf32> to vector<8x16xf32>
    %30 = arith.mulf %25, %29 : vector<8x16xf32>
    %c0_17 = arith.constant 0 : index
    %c0_18 = arith.constant 0 : index
    %c0_19 = arith.constant 0 : index
    %31 = vector.load %arg1[%c0_17, %c0_18, %c0_19] : memref<8x16x32xf32, #tpu.memory_space<vmem>>, vector<8x16x32xf32>
    %32 = vector.shape_cast %30 : vector<8x16xf32> to vector<8x16x1xf32>
    %33 = vector.broadcast %32 : vector<8x16x1xf32> to vector<8x16x32xf32>
    %34 = arith.mulf %31, %33 : vector<8x16x32xf32>
    %cst_20 = arith.constant dense<0.000000e+00> : vector<8x32xf32>
    %35 = vector.multi_reduction <add>, %34, %cst_20 [1] : vector<8x16x32xf32> to vector<8x32xf32>
    %c0_21 = arith.constant 0 : index
    %c0_22 = arith.constant 0 : index
    %36 = vector.load %arg7[%c0_21, %c0_22] : memref<8x32xf32, #tpu.memory_space<vmem>>, vector<8x32xf32>
    tpu.vector_store %arg7[%c0_21, %c0_22], %35 {strides = array<i32>} : memref<8x32xf32, #tpu.memory_space<vmem>>, vector<8x32xf32>,
    %c0_23 = arith.constant 0 : index
    %c0_24 = arith.constant 0 : index
    %37 = vector.load %arg8[%c0_23, %c0_24] : memref<8x16xf32, #tpu.memory_space<vmem>>, vector<8x16xf32>
    tpu.vector_store %arg8[%c0_23, %c0_24], %30 {strides = array<i32>} : memref<8x16xf32, #tpu.memory_space<vmem>>, vector<8x16xf32>,
    return
  }
  func.func @transform_0(%arg0: i32) -> (i32, i32, i32) {
    %c0_i32 = arith.constant 0 : i32
    %c0_i32_0 = arith.constant 0 : i32
    %c0_i32_1 = arith.constant 0 : i32
    return %arg0, %c0_i32, %c0_i32_0 : i32, i32, i32
  }
  func.func @transform_1(%arg0: i32) -> (i32, i32) {
    %c0_i32 = arith.constant 0 : i32
    %c0_i32_0 = arith.constant 0 : i32
    return %arg0, %c0_i32 : i32, i32
  }
  func.func @transform_2(%arg0: i32) -> (i32, i32) {
    %c0_i32 = arith.constant 0 : i32
    %c0_i32_0 = arith.constant 0 : i32
    %c0_i32_1 = arith.constant 0 : i32
    return %c0_i32, %c0_i32_0 : i32, i32
  }
  func.func @transform_3(%arg0: i32) -> (i32, i32) {
    %c0_i32 = arith.constant 0 : i32
    %c0_i32_0 = arith.constant 0 : i32
    %c0_i32_1 = arith.constant 0 : i32
    return %c0_i32, %c0_i32_0 : i32, i32
  }
  func.func @transform_4(%arg0: i32) -> (i32, i32) {
    %c0_i32 = arith.constant 0 : i32
    %c0_i32_0 = arith.constant 0 : i32
    %c0_i32_1 = arith.constant 0 : i32
    return %c0_i32, %c0_i32_0 : i32, i32
  }
  func.func @transform_5(%arg0: i32) -> (i32, i32) {
    %c0_i32 = arith.constant 0 : i32
    %c0_i32_0 = arith.constant 0 : i32
    %c0_i32_1 = arith.constant 0 : i32
    return %c0_i32, %c0_i32_0 : i32, i32
  }
  func.func @transform_6(%arg0: i32) -> (i32, i32) {
    %c0_i32 = arith.constant 0 : i32
    %c0_i32_0 = arith.constant 0 : i32
    return %arg0, %c0_i32 : i32, i32
  }
  func.func @transform_7(%arg0: i32) -> (i32, i32) {
    %c0_i32 = arith.constant 0 : i32
    %c0_i32_0 = arith.constant 0 : i32
    return %arg0, %c0_i32 : i32, i32
  }
}

</mosaic_0001>

<llo_original>
// kernel: tpu_custom_call.1
$region0: #{tpu_custom_call.1}
  #allocation0 [shape = 'u32[]', space=smem, size = 0x4, offset = 0x4, fixed_abs, tag = 'smem constant byte address 0x4 - core index']
  #allocation1 [shape = 'u32[144,128]{1,0:T(1,128)}', space=vmem, size = 0x12000, scoped, tag = 'internal scratch']
  %s0 = inlined_call_operand.hbm [shape: f32[16,16,32], index: 0, kind: input, shape index: {}]
  %s1 = inlined_call_operand.hbm [shape: f32[16,24], index: 1, kind: input, shape index: {}]
  %s2 = inlined_call_operand.hbm [shape: f32[32,40], index: 2, kind: input, shape index: {}]
  %s3 = inlined_call_operand.hbm [shape: f32[24,40], index: 3, kind: input, shape index: {}]
  %s4 = inlined_call_operand.vmem [shape: f32[1,40], index: 4, kind: input, shape index: {}]
  %s5 = inlined_call_operand.vmem [shape: f32[1,40], index: 5, kind: input, shape index: {}]
  %s6 = inlined_call_operand.hbm [shape: f32[16,32], index: 6, kind: output, shape index: {0}]
  %s7 = inlined_call_operand.hbm [shape: f32[16,16], index: 7, kind: output, shape index: {1}]
  %8 = xla_tuple %s6, %s7
  %s9 = sld [smem:[#allocation0]]
  $region81: #{tpu_custom_call.1} parent=0
    _
  %s11 = ssub.s32 1, %s9
  %s12 = scalar_select 0, %s11, %s9
  $region1: #{tpu_custom_call.1} parent=0
    #allocation2 [shape = 'u8[131072]{0}', space=vmem, size = 0x20000, scoped, tag = 'input window, operand 0']
    #allocation3 [shape = 's32[2]{0}', space=sflag, size = 0x8, scoped, tag = 'scoped memory for tpu_custom_call.1']
    #allocation4 [shape = 's32[2]{0}', space=sflag, size = 0x8, scoped, tag = 'scoped memory for tpu_custom_call.1']
    #allocation5 [shape = 'u8[8192]{0}', space=vmem, size = 0x2000, scoped, tag = 'input window, operand 1']
    #allocation6 [shape = 's32[2]{0}', space=sflag, size = 0x8, scoped, tag = 'scoped memory for tpu_custom_call.1']
    #allocation7 [shape = 'u8[16384]{0}', space=vmem, size = 0x4000, scoped, tag = 'input window, operand 2, single buffered']
    #allocation8 [shape = 'u8[12288]{0}', space=vmem, size = 0x3000, scoped, tag = 'input window, operand 3, single buffered']
    #allocation9 [shape = 's32[1]{0}', space=sflag, size = 0x4, scoped, tag = 'scoped memory for tpu_custom_call.1']
    #allocation10 [shape = 'u8[8192]{0}', space=vmem, size = 0x2000, scoped, tag = 'output window, operand 0']
    #allocation11 [shape = 'u8[8192]{0}', space=vmem, size = 0x2000, scoped, tag = 'output window, operand 1']
    #allocation12 [shape = 's32[2]{0}', space=sflag, size = 0x8, scoped, tag = 'scoped memory for tpu_custom_call.1']
    %13 = vsyncpa [#allocation3], 0
    %s14 = scalar_lea.sflag [#allocation3], 1
    %15 = vsyncpa %s14, 0
    %16 = vsyncpa [#allocation6], 0
    %s17 = scalar_lea.sflag [#allocation6], 1
    %18 = vsyncpa %s17, 0
    %19 = vsyncpa [#allocation9], 0
    %20 = vsyncpa [#allocation4], 0
    %s21 = scalar_lea.sflag [#allocation4], 1
    %22 = vsyncpa %s21, 0
    %23 = vsyncpa [#allocation12], 0
    %s24 = scalar_lea.sflag [#allocation12], 1
    %25 = vsyncpa %s24, 0
    loop: start=0, step=1, limit=4
    $region2: #{tpu_custom_call.1} parent=1 // loop_pre_header
      _
    $region3: #{tpu_custom_call.1} parent=1 // loop_header
      %s27 = sphi 0, %s31
      %p28 = scmp.ge.s32.totalorder %s27, 4
      %s37 = sphi 0, %s39
      %s40 = sphi 0, %s37
      %s41 = sphi 0, %s40
      %s57 = sphi 0, %s41
      %s63 = sphi 0, %s65
      %s66 = sphi 0, %s63
      %s67 = sphi 0, %s66
      %s83 = sphi 0, %s67
      %s87 = sphi 0, %s87
      %s89 = sphi 0, %s87
      %s90 = sphi 0, %s89
      %s104 = sphi 0, %s90
      %s108 = sphi 0, %s108
      %s110 = sphi 0, %s108
      %s111 = sphi 0, %s110
      %s125 = sphi 0, %s111
      %s129 = sphi 0, %s129
      %s131 = sphi 0, %s129
      %s132 = sphi 0, %s131
      %s146 = sphi 0, %s132
      %s150 = sphi 0, %s150
      %s152 = sphi 0, %s150
      %s153 = sphi 0, %s152
      %s167 = sphi 0, %s153
      %s173 = sphi 0, %s175
      %s176 = sphi 0, %s173
      %s177 = sphi 0, %s176
      %s193 = sphi 0, %s177
      %s199 = sphi 0, %s201
      %s202 = sphi 0, %s199
      %s203 = sphi 0, %s202
      %s219 = sphi 0, %s203
    $region4: #{tpu_custom_call.1} parent=1 // loop_header_branch
      %30 = sbr.rel (%p28) target = $region8
    $region5: #{tpu_custom_call.1} parent=1 // loop_body
      %s32 = ssub.s32 %s27, 1
      %s33 = ssub.s32 %s27, 2
      %s34 = sadd.s32 %s27, 1
      %s35 = ssub.s32 %s27, %s34
      %p36 = scmp.eq.s32.totalorder %s35, 0
      %s38 = sadd.s32 %s37, 1
      %s39 = scalar_select %p36, %s37, %s38
      %p42 = pneg %p36
      %p43 = scmp.eq.s32.totalorder %s27, 1
      %p44 = por %p42, %p43
      %p45 = scmp.ne.s32.totalorder %s37, %s40
      %p46 = scmp.eq.s32.totalorder %s27, 0
      %p47 = por %p45, %p46
      %p48 = scmp.ne.s32.totalorder %s37, %s40
      %p49 = scmp.eq.s32.totalorder %s32, 1
      %p50 = por %p48, %p49
      %p51 = scmp.ne.s32.totalorder %s40, %s41
      %p52 = scmp.eq.s32.totalorder %s32, 0
      %p53 = por %p51, %p52
      %p54 = scmp.ne.s32.totalorder %s40, %s41
      %p55 = scmp.eq.s32.totalorder %s33, 1
      %p56 = por %p54, %p55
      %p58 = scmp.ne.s32.totalorder %s41, %s57
      %p59 = scmp.eq.s32.totalorder %s33, 0
      %p60 = por %p58, %p59
      %s61 = ssub.s32 %s27, %s34
      %p62 = scmp.eq.s32.totalorder %s61, 0
      %s64 = sadd.s32 %s63, 1
      %s65 = scalar_select %p62, %s63, %s64
      %p68 = pneg %p62
      %p69 = scmp.eq.s32.totalorder %s27, 1
      %p70 = por %p68, %p69
      %p71 = scmp.ne.s32.totalorder %s63, %s66
      %p72 = scmp.eq.s32.totalorder %s27, 0
      %p73 = por %p71, %p72
      %p74 = scmp.ne.s32.totalorder %s63, %s66
      %p75 = scmp.eq.s32.totalorder %s32, 1
      %p76 = por %p74, %p75
      %p77 = scmp.ne.s32.totalorder %s66, %s67
      %p78 = scmp.eq.s32.totalorder %s32, 0
      %p79 = por %p77, %p78
      %p80 = scmp.ne.s32.totalorder %s66, %s67
      %p81 = scmp.eq.s32.totalorder %s33, 1
      %p82 = por %p80, %p81
      %p84 = scmp.ne.s32.totalorder %s67, %s83
      %p85 = scmp.eq.s32.totalorder %s33, 0
      %p86 = por %p84, %p85
      %s88 = sadd.s32 %s87, 1
      %p91 = scmp.eq.s32.totalorder %s27, 1
      %p92 = scmp.ne.s32.totalorder %s87, %s89
      %p93 = scmp.eq.s32.totalorder %s27, 0
      %p94 = por %p92, %p93
      %p95 = scmp.ne.s32.totalorder %s87, %s89
      %p96 = scmp.eq.s32.totalorder %s32, 1
      %p97 = por %p95, %p96
      %p98 = scmp.ne.s32.totalorder %s89, %s90
      %p99 = scmp.eq.s32.totalorder %s32, 0
      %p100 = por %p98, %p99
      %p101 = scmp.ne.s32.totalorder %s89, %s90
      %p102 = scmp.eq.s32.totalorder %s33, 1
      %p103 = por %p101, %p102
      %p105 = scmp.ne.s32.totalorder %s90, %s104
      %p106 = scmp.eq.s32.totalorder %s33, 0
      %p107 = por %p105, %p106
      %s109 = sadd.s32 %s108, 1
      %p112 = scmp.eq.s32.totalorder %s27, 1
      %p113 = scmp.ne.s32.totalorder %s108, %s110
      %p114 = scmp.eq.s32.totalorder %s27, 0
      %p115 = por %p113, %p114
      %p116 = scmp.ne.s32.totalorder %s108, %s110
      %p117 = scmp.eq.s32.totalorder %s32, 1
      %p118 = por %p116, %p117
      %p119 = scmp.ne.s32.totalorder %s110, %s111
      %p120 = scmp.eq.s32.totalorder %s32, 0
      %p121 = por %p119, %p120
      %p122 = scmp.ne.s32.totalorder %s110, %s111
      %p123 = scmp.eq.s32.totalorder %s33, 1
      %p124 = por %p122, %p123
      %p126 = scmp.ne.s32.totalorder %s111, %s125
      %p127 = scmp.eq.s32.totalorder %s33, 0
      %p128 = por %p126, %p127
      %s130 = sadd.s32 %s129, 1
      %p133 = scmp.eq.s32.totalorder %s27, 1
      %p134 = scmp.ne.s32.totalorder %s129, %s131
      %p135 = scmp.eq.s32.totalorder %s27, 0
      %p136 = por %p134, %p135
      %p137 = scmp.ne.s32.totalorder %s129, %s131
      %p138 = scmp.eq.s32.totalorder %s32, 1
      %p139 = por %p137, %p138
      %p140 = scmp.ne.s32.totalorder %s131, %s132
      %p141 = scmp.eq.s32.totalorder %s32, 0
      %p142 = por %p140, %p141
      %p143 = scmp.ne.s32.totalorder %s131, %s132
      %p144 = scmp.eq.s32.totalorder %s33, 1
      %p145 = por %p143, %p144
      %p147 = scmp.ne.s32.totalorder %s132, %s146
      %p148 = scmp.eq.s32.totalorder %s33, 0
      %p149 = por %p147, %p148
      %s151 = sadd.s32 %s150, 1
      %p154 = scmp.eq.s32.totalorder %s27, 1
      %p155 = scmp.ne.s32.totalorder %s150, %s152
      %p156 = scmp.eq.s32.totalorder %s27, 0
      %p157 = por %p155, %p156
      %p158 = scmp.ne.s32.totalorder %s150, %s152
      %p159 = scmp.eq.s32.totalorder %s32, 1
      %p160 = por %p158, %p159
      %p161 = scmp.ne.s32.totalorder %s152, %s153
      %p162 = scmp.eq.s32.totalorder %s32, 0
      %p163 = por %p161, %p162
      %p164 = scmp.ne.s32.totalorder %s152, %s153
      %p165 = scmp.eq.s32.totalorder %s33, 1
      %p166 = por %p164, %p165
      %p168 = scmp.ne.s32.totalorder %s153, %s167
      %p169 = scmp.eq.s32.totalorder %s33, 0
      %p170 = por %p168, %p169
      %s171 = ssub.s32 %s27, %s34
      %p172 = scmp.eq.s32.totalorder %s171, 0
      %s174 = sadd.s32 %s173, 1
      %s175 = scalar_select %p172, %s173, %s174
      %p178 = pneg %p172
      %p179 = scmp.eq.s32.totalorder %s27, 1
      %p180 = por %p178, %p179
      %p181 = scmp.ne.s32.totalorder %s173, %s176
      %p182 = scmp.eq.s32.totalorder %s27, 0
      %p183 = por %p181, %p182
      %p184 = scmp.ne.s32.totalorder %s173, %s176
      %p185 = scmp.eq.s32.totalorder %s32, 1
      %p186 = por %p184, %p185
      %p187 = scmp.ne.s32.totalorder %s176, %s177
      %p188 = scmp.eq.s32.totalorder %s32, 0
      %p189 = por %p187, %p188
      %p190 = scmp.ne.s32.totalorder %s176, %s177
      %p191 = scmp.eq.s32.totalorder %s33, 1
      %p192 = por %p190, %p191
      %p194 = scmp.ne.s32.totalorder %s177, %s193
      %p195 = scmp.eq.s32.totalorder %s33, 0
      %p196 = por %p194, %p195
      %s197 = ssub.s32 %s27, %s34
      %p198 = scmp.eq.s32.totalorder %s197, 0
      %s200 = sadd.s32 %s199, 1
      %s201 = scalar_select %p198, %s199, %s200
      %p204 = pneg %p198
      %p205 = scmp.eq.s32.totalorder %s27, 1
      %p206 = por %p204, %p205
      %p207 = scmp.ne.s32.totalorder %s199, %s202
      %p208 = scmp.eq.s32.totalorder %s27, 0
      %p209 = por %p207, %p208
      %p210 = scmp.ne.s32.totalorder %s199, %s202
      %p211 = scmp.eq.s32.totalorder %s32, 1
      %p212 = por %p210, %p211
      %p213 = scmp.ne.s32.totalorder %s202, %s203
      %p214 = scmp.eq.s32.totalorder %s32, 0
      %p215 = por %p213, %p214
      %p216 = scmp.ne.s32.totalorder %s202, %s203
      %p217 = scmp.eq.s32.totalorder %s33, 1
      %p218 = por %p216, %p217
      %p220 = scmp.ne.s32.totalorder %s203, %s219
      %p221 = scmp.eq.s32.totalorder %s33, 0
      %p222 = por %p220, %p221
      %p223 = scmp.le.s32.totalorder 1, %s27
      %p224 = scmp.lt.s32.totalorder %s27, 3
      %p225 = pnand %p223, %p224
      %p226 = pneg %p225
      // Predicated region
      $region9: #{tpu_custom_call.1} parent=5 // pred_check
        _
      $region10: #{tpu_custom_call.1} parent=5 // pred_check_branch
        %228 = sbr.rel (%p225) target = $region12
      $region11: #{tpu_custom_call.1} parent=5 // pred_region
        %s229 = ssub.s32 %s27, 1
        // Predicated region
        $region13: #{tpu_custom_call.1} parent=11 // pred_check
          %p230 = pneg %p100
        $region14: #{tpu_custom_call.1} parent=11 // pred_check_branch
          %232 = sbr.rel (%p230) target = $region16
        $region15: #{tpu_custom_call.1} parent=11 // pred_region
          %s234 = ssub.s32 512, 512
          %235 = vsyncadd [#allocation6], %s234
          %s236 = sshll.u32 [#allocation7], 4
          %s237 = int_to_ptr.vmem [resolvable:$true] %s236
          %242 = dma.hbm_to_vmem [thread:$0]  %s2, 512, %s237, [#allocation6], 128, 128, 8
        $region16: #{tpu_custom_call.1} parent=11 // pred_fallthru
          _
        // Predicated region
        $region17: #{tpu_custom_call.1} parent=11 // pred_check
          %p243 = pneg %p121
        $region18: #{tpu_custom_call.1} parent=11 // pred_check_branch
          %245 = sbr.rel (%p243) target = $region20
        $region19: #{tpu_custom_call.1} parent=11 // pred_region
          %s247 = ssub.s32 384, 384
          %248 = vsyncadd [#allocation9], %s247
          %s249 = sshll.u32 [#allocation8], 4
          %s250 = int_to_ptr.vmem [resolvable:$true] %s249
          %255 = dma.hbm_to_vmem [thread:$0]  %s3, 384, %s250, [#allocation9], 128, 128, 8
        $region20: #{tpu_custom_call.1} parent=11 // pred_fallthru
          _
        // Predicated region
        $region21: #{tpu_custom_call.1} parent=11 // pred_check
          %p256 = pneg %p142
        $region22: #{tpu_custom_call.1} parent=11 // pred_check_branch
          %258 = sbr.rel (%p256) target = $region24
        $region23: #{tpu_custom_call.1} parent=11 // pred_region
          _
        $region24: #{tpu_custom_call.1} parent=11 // pred_fallthru
          _
        // Predicated region
        $region25: #{tpu_custom_call.1} parent=11 // pred_check
          %p259 = pneg %p163
        $region26: #{tpu_custom_call.1} parent=11 // pred_check_branch
          %261 = sbr.rel (%p259) target = $region28
        $region27: #{tpu_custom_call.1} parent=11 // pred_region
          _
        $region28: #{tpu_custom_call.1} parent=11 // pred_fallthru
          _
      $region12: #{tpu_custom_call.1} parent=5 // pred_fallthru
        _
      %p262 = scmp.lt.s32.totalorder %s27, 2
      // Predicated region
      $region29: #{tpu_custom_call.1} parent=5 // pred_check
        %p263 = pneg %p262
      $region30: #{tpu_custom_call.1} parent=5 // pred_check_branch
        %265 = sbr.rel (%p263) target = $region32
      $region31: #{tpu_custom_call.1} parent=5 // pred_region
        // Predicated region
        $region33: #{tpu_custom_call.1} parent=31 // pred_check
          %p266 = pneg %p47
        $region34: #{tpu_custom_call.1} parent=31 // pred_check_branch
          %268 = sbr.rel (%p266) target = $region36
        $region35: #{tpu_custom_call.1} parent=31 // pred_region
          %s269 = sand.u32 %s37, 1
          %s270 = scalar_lea.sflag [#allocation3], %s269
          %s271 = sand.u32 %s37, 1
          %s272 = smul.addr %s271, 128
          %s273 = scalar_lea.vmem [#allocation2], %s272
          %s274 = smul.u32 8, %s27
          %s276 = ssub.s32 2048, 2048
          %277 = vsyncadd %s270, %s276
          %s278 = smul.addr %s274, 2
          %s279 = smul.addr %s278, 128
          %s280 = scalar_lea.hbm %s0, %s279
          %s281 = sshll.u32 %s273, 4
          %s282 = int_to_ptr.vmem [resolvable:$true] %s281
          %287 = dma.hbm_to_vmem [thread:$0]  %s280, 2048, %s282, %s270, 128, 128, 8
        $region36: #{tpu_custom_call.1} parent=31 // pred_fallthru
          _
        // Predicated region
        $region37: #{tpu_custom_call.1} parent=31 // pred_check
          %p288 = pneg %p73
        $region38: #{tpu_custom_call.1} parent=31 // pred_check_branch
          %290 = sbr.rel (%p288) target = $region40
        $region39: #{tpu_custom_call.1} parent=31 // pred_region
          %s291 = sand.u32 %s27, 1
          %s292 = scalar_lea.sflag [#allocation6], %s291
          %s293 = sand.u32 %s63, 1
          %s294 = smul.addr %s293, 8
          %s295 = scalar_lea.vmem [#allocation5], %s294
          %s297 = ssub.s32 128, 128
          %298 = vsyncadd %s292, %s297
          %s299 = smul.addr %s27, 128
          %s300 = scalar_lea.hbm %s1, %s299
          %s302 = sshll.u32 %s295, 4
          %s303 = int_to_ptr.vmem [resolvable:$true] %s302
          %305 = dma.hbm_to_vmem [thread:$0]  %s300, 128, %s303, %s292
        $region40: #{tpu_custom_call.1} parent=31 // pred_fallthru
          _
      $region32: #{tpu_custom_call.1} parent=5 // pred_fallthru
        _
      %p306 = scmp.le.s32.totalorder 1, %s27
      %p307 = scmp.lt.s32.totalorder %s27, 3
      %p308 = pnand %p306, %p307
      %p309 = pneg %p308
      // Predicated region
      $region41: #{tpu_custom_call.1} parent=5 // pred_check
        _
      $region42: #{tpu_custom_call.1} parent=5 // pred_check_branch
        %311 = sbr.rel (%p308) target = $region44
      $region43: #{tpu_custom_call.1} parent=5 // pred_region
        %s312 = ssub.s32 %s27, 1
        %s313 = sand.u32 %s40, 1
        %s314 = scalar_lea.sflag [#allocation3], %s313
        %s315 = sand.u32 %s40, 1
        %s316 = smul.addr %s315, 128
        %s317 = scalar_lea.vmem [#allocation2], %s316
        // Predicated region
        $region45: #{tpu_custom_call.1} parent=43 // pred_check
          %p318 = pneg %p53
        $region46: #{tpu_custom_call.1} parent=43 // pred_check_branch
          %320 = sbr.rel (%p318) target = $region48
        $region47: #{tpu_custom_call.1} parent=43 // pred_region
          %321 = dma.done %s314, 2048
        $region48: #{tpu_custom_call.1} parent=43 // pred_fallthru
          _
        %s322 = sand.u32 %s32, 1
        %s323 = scalar_lea.sflag [#allocation6], %s322
        %s324 = sand.u32 %s66, 1
        %s325 = smul.addr %s324, 8
        %s326 = scalar_lea.vmem [#allocation5], %s325
        // Predicated region
        $region49: #{tpu_custom_call.1} parent=43 // pred_check
          %p327 = pneg %p79
        $region50: #{tpu_custom_call.1} parent=43 // pred_check_branch
          %329 = sbr.rel (%p327) target = $region52
        $region51: #{tpu_custom_call.1} parent=43 // pred_region
          %330 = dma.done %s323, 128
        $region52: #{tpu_custom_call.1} parent=43 // pred_fallthru
          _
        // Predicated region
        $region53: #{tpu_custom_call.1} parent=43 // pred_check
          %p331 = pneg %p100
        $region54: #{tpu_custom_call.1} parent=43 // pred_check_branch
          %333 = sbr.rel (%p331) target = $region56
        $region55: #{tpu_custom_call.1} parent=43 // pred_region
          %334 = dma.done [#allocation6], 512
        $region56: #{tpu_custom_call.1} parent=43 // pred_fallthru
          _
        // Predicated region
        $region57: #{tpu_custom_call.1} parent=43 // pred_check
          %p335 = pneg %p121
        $region58: #{tpu_custom_call.1} parent=43 // pred_check_branch
          %337 = sbr.rel (%p335) target = $region60
        $region59: #{tpu_custom_call.1} parent=43 // pred_region
          %338 = dma.done [#allocation9], 384
        $region60: #{tpu_custom_call.1} parent=43 // pred_fallthru
          _
        %s339 = sand.u32 %s40, 1
        %s340 = scalar_lea.sflag [#allocation3], %s339
        %s341 = sand.u32 %s40, 1
        %s342 = smul.addr %s341, 128
        %s343 = scalar_lea.vmem [#allocation2], %s342
        %p344 = pneg %p53
        %p345 = pneg %p50
        %s346 = sand.u32 %s32, 1
        %s347 = scalar_lea.sflag [#allocation6], %s346
        %s348 = sand.u32 %s66, 1
        %s349 = smul.addr %s348, 8
        %s350 = scalar_lea.vmem [#allocation5], %s349
        %p351 = pneg %p79
        %p352 = pneg %p76
        %p353 = pneg %p100
        %p354 = pneg %p97
        %p355 = pneg %p121
        %p356 = pneg %p118
        %p357 = pneg %p142
        %p358 = pneg %p139
        %p359 = pneg %p163
        %p360 = pneg %p160
        %p361 = pneg %p189
        %p362 = pneg %p186
        %s363 = sand.u32 %s176, 1
        %s364 = scalar_lea.sflag [#allocation4], %s363
        %s365 = sand.u32 %s176, 1
        %s366 = smul.addr %s365, 8
        %s367 = scalar_lea.vmem [#allocation10], %s366
        %p368 = pneg %p215
        %p369 = pneg %p212
        %s370 = sand.u32 %s202, 1
        %s371 = scalar_lea.sflag [#allocation12], %s370
        %s372 = sand.u32 %s202, 1
        %s373 = smul.addr %s372, 8
        %s374 = scalar_lea.vmem [#allocation11], %s373
        %s375 = smul.u32 8, %s32
        %v376 = vld [vmem:[%s317] sm:$0xff]
        %v377 = vld [vmem:[%s317 + $0x8] sm:$0xff]
        %v378 = vld [vmem:[%s317 + $0x10] sm:$0xff]
        %v379 = vld [vmem:[%s317 + $0x18] sm:$0xff]
        %v380 = vld [vmem:[%s317 + $0x20] sm:$0xff]
        %v381 = vld [vmem:[%s317 + $0x28] sm:$0xff]
        %v382 = vld [vmem:[%s317 + $0x30] sm:$0xff]
        %v383 = vld [vmem:[%s317 + $0x38] sm:$0xff]
        %v384 = vld [vmem:[%s317 + $0x40] sm:$0xff]
        %v385 = vld [vmem:[%s317 + $0x48] sm:$0xff]
        %v386 = vld [vmem:[%s317 + $0x50] sm:$0xff]
        %v387 = vld [vmem:[%s317 + $0x58] sm:$0xff]
        %v388 = vld [vmem:[%s317 + $0x60] sm:$0xff]
        %v389 = vld [vmem:[%s317 + $0x68] sm:$0xff]
        %v390 = vld [vmem:[%s317 + $0x70] sm:$0xff]
        %v391 = vld [vmem:[%s317 + $0x78] sm:$0xff]
        %v392 = vld [vmem:[#allocation7] sm:$0xff]
        %v393 = vld [vmem:[#allocation7 + $0x8] sm:$0xff]
        %v394 = vld [vmem:[#allocation7 + $0x10] sm:$0xff]
        %v395 = vld [vmem:[#allocation7 + $0x18] sm:$0xff]
        %vm396 = vcmask 261120
        %v398 = vsel %vm396, %v376, 0
        %v401 = vsel %vm396, %v377, 0
        %v404 = vsel %vm396, %v378, 0
        %v407 = vsel %vm396, %v379, 0
        %v410 = vsel %vm396, %v380, 0
        %v413 = vsel %vm396, %v381, 0
        %v416 = vsel %vm396, %v382, 0
        %v419 = vsel %vm396, %v383, 0
        %v422 = vsel %vm396, %v384, 0
        %v425 = vsel %vm396, %v385, 0
        %v428 = vsel %vm396, %v386, 0
        %v431 = vsel %vm396, %v387, 0
        %v434 = vsel %vm396, %v388, 0
        %v437 = vsel %vm396, %v389, 0
        %v440 = vsel %vm396, %v390, 0
        %v443 = vsel %vm396, %v391, 0
        %445 = vmatprep.subr.mxu0 0.0
        %446 = vmatpush1.msra.mxu0 0.0
        %447 = vmatprep.subr.mxu0 0.0
        %448 = vmatpush1.msra.mxu0 0.0
        %449 = vmatprep.subr.mxu0 0.0
        %450 = vmatpush1.msra.mxu0 0.0
        %451 = vmatprep.subr.mxu0 0.0
        %452 = vmatpush1.msra.mxu0 0.0
        %453 = vmatprep.subr.mxu0 0.0
        %454 = vmatpush1.msra.mxu0 0.0
        %455 = vmatprep.subr.mxu0 0.0
        %456 = vmatpush1.msra.mxu0 0.0
        %457 = vmatprep.subr.mxu0 0.0
        %458 = vmatpush1.msra.mxu0 0.0
        %459 = vmatprep.subr.mxu0 0.0
        %460 = vmatpush1.msra.mxu0 0.0
        %461 = vmatprep.subr.mxu0 0.0
        %462 = vmatpush1.msra.mxu0 0.0
        %463 = vmatprep.subr.mxu0 0.0
        %464 = vmatpush1.msra.mxu0 0.0
        %465 = vmatprep.subr.mxu0 0.0
        %466 = vmatpush1.msra.mxu0 0.0
        %467 = vmatprep.subr.mxu0 0.0
        %468 = vmatpush1.msra.mxu0 0.0
        %469 = vmatprep.subr.mxu0 0.0
        %470 = vmatpush1.msra.mxu0 %v395
        %471 = vmatprep.subr.mxu0 0.0
        %472 = vmatpush1.msra.mxu0 %v394
        %473 = vmatprep.subr.mxu0 0.0
        %474 = vmatpush1.msra.mxu0 %v393
        %475 = vmatprep.subr.mxu0 0.0
        %476 = vmatpush1.msra.mxu0 %v392
        %477 = vmatprep.subr.mxu0 0.0
        %478 = vmatpush2.msra.mxu0 0.0
        %479 = vmatprep.subr.mxu0 0.0
        %480 = vmatpush2.msra.mxu0 0.0
        %481 = vmatprep.subr.mxu0 0.0
        %482 = vmatpush2.msra.mxu0 0.0
        %483 = vmatprep.subr.mxu0 0.0
        %484 = vmatpush2.msra.mxu0 0.0
        %485 = vmatprep.subr.mxu0 0.0
        %486 = vmatpush2.msra.mxu0 0.0
        %487 = vmatprep.subr.mxu0 0.0
        %488 = vmatpush2.msra.mxu0 0.0
        %489 = vmatprep.subr.mxu0 0.0
        %490 = vmatpush2.msra.mxu0 0.0
        %491 = vmatprep.subr.mxu0 0.0
        %492 = vmatpush2.msra.mxu0 0.0
        %493 = vmatprep.subr.mxu0 0.0
        %494 = vmatpush2.msra.mxu0 0.0
        %495 = vmatprep.subr.mxu0 0.0
        %496 = vmatpush2.msra.mxu0 0.0
        %497 = vmatprep.subr.mxu0 0.0
        %498 = vmatpush2.msra.mxu0 0.0
        %499 = vmatprep.subr.mxu0 0.0
        %500 = vmatpush2.msra.mxu0 0.0
        %501 = vmatprep.subr.mxu0 0.0
        %502 = vmatpush2.msra.mxu0 0.0
        %503 = vmatprep.subr.mxu0 0.0
        %504 = vmatpush2.msra.mxu0 0.0
        %505 = vmatprep.subr.mxu0 0.0
        %506 = vmatpush2.msra.mxu0 0.0
        %507 = vmatprep.subr.mxu0 0.0
        %508 = vmatpush2.msra.mxu0 0.0
        %509 = vmatprep.mubr.f32.mxu0 0.0
        %510 = vmatmul.mubr.f32.gmra.mxu0 %v398
        %v511 = vpop.f32.mrf.mxu0
        %v512 = vadd.f32 0.0, %v511
        %v513 = vpop.f32.mrf.mxu0
        %514 = vmatprep.mubr.f32.mxu0 0.0
        %515 = vmatmul.mubr.f32.gmra.mxu0 %v401
        %v516 = vpop.f32.mrf.mxu0
        %v517 = vadd.f32 0.0, %v516
        %v518 = vpop.f32.mrf.mxu0
        %519 = vmatprep.mubr.f32.mxu0 0.0
        %520 = vmatmul.mubr.f32.gmra.mxu0 %v404
        %v521 = vpop.f32.mrf.mxu0
        %v522 = vadd.f32 0.0, %v521
        %v523 = vpop.f32.mrf.mxu0
        %524 = vmatprep.mubr.f32.mxu0 0.0
        %525 = vmatmul.mubr.f32.gmra.mxu0 %v407
        %v526 = vpop.f32.mrf.mxu0
        %v527 = vadd.f32 0.0, %v526
        %v528 = vpop.f32.mrf.mxu0
        %529 = vmatprep.mubr.f32.mxu0 0.0
        %530 = vmatmul.mubr.f32.gmra.mxu0 %v410
        %v531 = vpop.f32.mrf.mxu0
        %v532 = vadd.f32 0.0, %v531
        %v533 = vpop.f32.mrf.mxu0
        %534 = vmatprep.mubr.f32.mxu0 0.0
        %535 = vmatmul.mubr.f32.gmra.mxu0 %v413
        %v536 = vpop.f32.mrf.mxu0
        %v537 = vadd.f32 0.0, %v536
        %v538 = vpop.f32.mrf.mxu0
        %539 = vmatprep.mubr.f32.mxu0 0.0
        %540 = vmatmul.mubr.f32.gmra.mxu0 %v416
        %v541 = vpop.f32.mrf.mxu0
        %v542 = vadd.f32 0.0, %v541
        %v543 = vpop.f32.mrf.mxu0
        %544 = vmatprep.mubr.f32.mxu0 0.0
        %545 = vmatmul.mubr.f32.gmra.mxu0 %v419
        %v546 = vpop.f32.mrf.mxu0
        %v547 = vadd.f32 0.0, %v546
        %v548 = vpop.f32.mrf.mxu0
        %549 = vmatprep.mubr.f32.mxu0 0.0
        %550 = vmatmul.mubr.f32.gmra.mxu0 %v422
        %v551 = vpop.f32.mrf.mxu0
        %v552 = vadd.f32 0.0, %v551
        %v553 = vpop.f32.mrf.mxu0
        %554 = vmatprep.mubr.f32.mxu0 0.0
        %555 = vmatmul.mubr.f32.gmra.mxu0 %v425
        %v556 = vpop.f32.mrf.mxu0
        %v557 = vadd.f32 0.0, %v556
        %v558 = vpop.f32.mrf.mxu0
        %559 = vmatprep.mubr.f32.mxu0 0.0
        %560 = vmatmul.mubr.f32.gmra.mxu0 %v428
        %v561 = vpop.f32.mrf.mxu0
        %v562 = vadd.f32 0.0, %v561
        %v563 = vpop.f32.mrf.mxu0
        %564 = vmatprep.mubr.f32.mxu0 0.0
        %565 = vmatmul.mubr.f32.gmra.mxu0 %v431
        %v566 = vpop.f32.mrf.mxu0
        %v567 = vadd.f32 0.0, %v566
        %v568 = vpop.f32.mrf.mxu0
        %569 = vmatprep.mubr.f32.mxu0 0.0
        %570 = vmatmul.mubr.f32.gmra.mxu0 %v434
        %v571 = vpop.f32.mrf.mxu0
        %v572 = vadd.f32 0.0, %v571
        %v573 = vpop.f32.mrf.mxu0
        %574 = vmatprep.mubr.f32.mxu0 0.0
        %575 = vmatmul.mubr.f32.gmra.mxu0 %v437
        %v576 = vpop.f32.mrf.mxu0
        %v577 = vadd.f32 0.0, %v576
        %v578 = vpop.f32.mrf.mxu0
        %579 = vmatprep.mubr.f32.mxu0 0.0
        %580 = vmatmul.mubr.f32.gmra.mxu0 %v440
        %v581 = vpop.f32.mrf.mxu0
        %v582 = vadd.f32 0.0, %v581
        %v583 = vpop.f32.mrf.mxu0
        %584 = vmatprep.mubr.f32.mxu0 0.0
        %585 = vmatmul.mubr.f32.gmra.mxu0 %v443
        %v586 = vpop.f32.mrf.mxu0
        %v587 = vadd.f32 0.0, %v586
        %v588 = vpop.f32.mrf.mxu0
        %589 = vdwg.mxu0
        %v590 = vld [vmem:[%s326] sm:$0xff]
        %v591 = vld [vmem:[#allocation8] sm:$0xff]
        %v592 = vld [vmem:[#allocation8 + $0x8] sm:$0xff]
        %v593 = vld [vmem:[#allocation8 + $0x10] sm:$0xff]
        %v594 = vld [vmem:[%s4] sm:$0x1]
        %v596 = vlaneseq
        %v597 = vshrl.u32 %v596, 7
        %v598 = vsub.s32 0, %v597
        %v599 = vrot.slane %v594, %v598
        %vm601 = vcmask 195584
        %v603 = vsel %vm601, %v590, 0
        %605 = vmatprep.subr.mxu0 0.0
        %606 = vmatpush1.msra.mxu0 0.0
        %607 = vmatprep.subr.mxu0 0.0
        %608 = vmatpush1.msra.mxu0 0.0
        %609 = vmatprep.subr.mxu0 0.0
        %610 = vmatpush1.msra.mxu0 0.0
        %611 = vmatprep.subr.mxu0 0.0
        %612 = vmatpush1.msra.mxu0 0.0
        %613 = vmatprep.subr.mxu0 0.0
        %614 = vmatpush1.msra.mxu0 0.0
        %615 = vmatprep.subr.mxu0 0.0
        %616 = vmatpush1.msra.mxu0 0.0
        %617 = vmatprep.subr.mxu0 0.0
        %618 = vmatpush1.msra.mxu0 0.0
        %619 = vmatprep.subr.mxu0 0.0
        %620 = vmatpush1.msra.mxu0 0.0
        %621 = vmatprep.subr.mxu0 0.0
        %622 = vmatpush1.msra.mxu0 0.0
        %623 = vmatprep.subr.mxu0 0.0
        %624 = vmatpush1.msra.mxu0 0.0
        %625 = vmatprep.subr.mxu0 0.0
        %626 = vmatpush1.msra.mxu0 0.0
        %627 = vmatprep.subr.mxu0 0.0
        %628 = vmatpush1.msra.mxu0 0.0
        %629 = vmatprep.subr.mxu0 0.0
        %630 = vmatpush1.msra.mxu0 0.0
        %631 = vmatprep.subr.mxu0 0.0
        %632 = vmatpush1.msra.mxu0 %v593
        %633 = vmatprep.subr.mxu0 0.0
        %634 = vmatpush1.msra.mxu0 %v592
        %635 = vmatprep.subr.mxu0 0.0
        %636 = vmatpush1.msra.mxu0 %v591
        %637 = vmatprep.subr.mxu0 0.0
        %638 = vmatpush2.msra.mxu0 0.0
        %639 = vmatprep.subr.mxu0 0.0
        %640 = vmatpush2.msra.mxu0 0.0
        %641 = vmatprep.subr.mxu0 0.0
        %642 = vmatpush2.msra.mxu0 0.0
        %643 = vmatprep.subr.mxu0 0.0
        %644 = vmatpush2.msra.mxu0 0.0
        %645 = vmatprep.subr.mxu0 0.0
        %646 = vmatpush2.msra.mxu0 0.0
        %647 = vmatprep.subr.mxu0 0.0
        %648 = vmatpush2.msra.mxu0 0.0
        %649 = vmatprep.subr.mxu0 0.0
        %650 = vmatpush2.msra.mxu0 0.0
        %651 = vmatprep.subr.mxu0 0.0
        %652 = vmatpush2.msra.mxu0 0.0
        %653 = vmatprep.subr.mxu0 0.0
        %654 = vmatpush2.msra.mxu0 0.0
        %655 = vmatprep.subr.mxu0 0.0
        %656 = vmatpush2.msra.mxu0 0.0
        %657 = vmatprep.subr.mxu0 0.0
        %658 = vmatpush2.msra.mxu0 0.0
        %659 = vmatprep.subr.mxu0 0.0
        %660 = vmatpush2.msra.mxu0 0.0
        %661 = vmatprep.subr.mxu0 0.0
        %662 = vmatpush2.msra.mxu0 0.0
        %663 = vmatprep.subr.mxu0 0.0
        %664 = vmatpush2.msra.mxu0 0.0
        %665 = vmatprep.subr.mxu0 0.0
        %666 = vmatpush2.msra.mxu0 0.0
        %667 = vmatprep.subr.mxu0 0.0
        %668 = vmatpush2.msra.mxu0 0.0
        %669 = vmatprep.mubr.f32.mxu0 0.0
        %670 = vmatmul.mubr.f32.gmra.mxu0 %v603
        %v671 = vpop.f32.mrf.mxu0
        %v672 = vadd.f32 %v599, %v671
        %v673 = vpop.f32.mrf.mxu0
        %674 = vdwg.mxu0
        %v676 = vcombine.high %v672, %v672
        %v678 = vunpack.c.l.s4 1966171168
        %v679 = vunpack.c.0.s8 %v678
        %v680 = vlaneseq
        %v681 = vshrl.u32 %v680, 7
        %v682 = vsub.s32 %v679, %v681
        %v683 = vrot.slane %v672, %v682
        %v685 = vunpack.c.l.s4 1966171168
        %v686 = vunpack.c.0.s8 %v685
        %v687 = vlaneseq
        %v688 = vshrl.u32 %v687, 7
        %v689 = vsub.s32 %v686, %v688
        %v690 = vrot.slane %v676, %v689
        %v691 = vcombine.high %v683, %v683
        %v692 = vcombine.high %v690, %v690
        %v694 = vunpack.c.l.s4 1966171168
        %v695 = vunpack.c.0.s8 %v694
        %v696 = vlaneseq
        %v697 = vshrl.u32 %v696, 7
        %v698 = vsub.s32 %v695, %v697
        %v699 = vrot.slane %v683, %v698
        %v701 = vunpack.c.l.s4 1966171168
        %v702 = vunpack.c.0.s8 %v701
        %v703 = vlaneseq
        %v704 = vshrl.u32 %v703, 7
        %v705 = vsub.s32 %v702, %v704
        %v706 = vrot.slane %v690, %v705
        %v708 = vunpack.c.l.s4 1966171168
        %v709 = vunpack.c.0.s8 %v708
        %v710 = vlaneseq
        %v711 = vshrl.u32 %v710, 7
        %v712 = vsub.s32 %v709, %v711
        %v713 = vrot.slane %v691, %v712
        %v715 = vunpack.c.l.s4 1966171168
        %v716 = vunpack.c.0.s8 %v715
        %v717 = vlaneseq
        %v718 = vshrl.u32 %v717, 7
        %v719 = vsub.s32 %v716, %v718
        %v720 = vrot.slane %v692, %v719
        %v721 = vcombine.high %v699, %v699
        %v722 = vcombine.high %v706, %v706
        %v723 = vcombine.high %v713, %v713
        %v724 = vcombine.high %v720, %v720
        %v725 = vlaneseq
        %v726 = vshrl.u32 %v725, 7
        %v727 = vsub.s32 0, %v726
        %v728 = vrot.slane %v699, %v727
        %v729 = vlaneseq
        %v730 = vshrl.u32 %v729, 7
        %v731 = vsub.s32 0, %v730
        %v732 = vrot.slane %v713, %v731
        %v733 = vlaneseq
        %v734 = vshrl.u32 %v733, 7
        %v735 = vsub.s32 0, %v734
        %v736 = vrot.slane %v721, %v735
        %v737 = vlaneseq
        %v738 = vshrl.u32 %v737, 7
        %v739 = vsub.s32 0, %v738
        %v740 = vrot.slane %v723, %v739
        %v741 = vlaneseq
        %v742 = vshrl.u32 %v741, 7
        %v743 = vsub.s32 0, %v742
        %v744 = vrot.slane %v706, %v743
        %v745 = vlaneseq
        %v746 = vshrl.u32 %v745, 7
        %v747 = vsub.s32 0, %v746
        %v748 = vrot.slane %v720, %v747
        %v749 = vlaneseq
        %v750 = vshrl.u32 %v749, 7
        %v751 = vsub.s32 0, %v750
        %v752 = vrot.slane %v722, %v751
        %v753 = vlaneseq
        %v754 = vshrl.u32 %v753, 7
        %v755 = vsub.s32 0, %v754
        %v756 = vrot.slane %v724, %v755
        %v765 = vadd.f32 %v512, %v728
        %v766 = vadd.f32 %v517, %v728
        %v767 = vadd.f32 %v522, %v732
        %v768 = vadd.f32 %v527, %v732
        %v769 = vadd.f32 %v532, %v736
        %v770 = vadd.f32 %v537, %v736
        %v771 = vadd.f32 %v542, %v740
        %v772 = vadd.f32 %v547, %v740
        %v773 = vadd.f32 %v552, %v744
        %v774 = vadd.f32 %v557, %v744
        %v775 = vadd.f32 %v562, %v748
        %v776 = vadd.f32 %v567, %v748
        %v777 = vadd.f32 %v572, %v752
        %v778 = vadd.f32 %v577, %v752
        %v779 = vadd.f32 %v582, %v756
        %v780 = vadd.f32 %v587, %v756
        %v781 = vmax.f32 %v765, 0.0
        %v782 = vmax.f32 %v766, 0.0
        %v783 = vmax.f32 %v767, 0.0
        %v784 = vmax.f32 %v768, 0.0
        %v785 = vmax.f32 %v769, 0.0
        %v786 = vmax.f32 %v770, 0.0
        %v787 = vmax.f32 %v771, 0.0
        %v788 = vmax.f32 %v772, 0.0
        %v789 = vmax.f32 %v773, 0.0
        %v790 = vmax.f32 %v774, 0.0
        %v791 = vmax.f32 %v775, 0.0
        %v792 = vmax.f32 %v776, 0.0
        %v793 = vmax.f32 %v777, 0.0
        %v794 = vmax.f32 %v778, 0.0
        %v795 = vmax.f32 %v779, 0.0
        %v796 = vmax.f32 %v780, 0.0
        %v797 = vld [vmem:[%s5] sm:$0x1]
        %v799 = vlaneseq
        %v800 = vshrl.u32 %v799, 7
        %v801 = vsub.s32 0, %v800
        %v802 = vrot.slane %v797, %v801
        %v804 = vmul.f32 %v781, %v802
        %v805 = vmul.f32 %v782, %v802
        %v806 = vmul.f32 %v783, %v802
        %v807 = vmul.f32 %v784, %v802
        %v808 = vmul.f32 %v785, %v802
        %v809 = vmul.f32 %v786, %v802
        %v810 = vmul.f32 %v787, %v802
        %v811 = vmul.f32 %v788, %v802
        %v812 = vmul.f32 %v789, %v802
        %v813 = vmul.f32 %v790, %v802
        %v814 = vmul.f32 %v791, %v802
        %v815 = vmul.f32 %v792, %v802
        %v816 = vmul.f32 %v793, %v802
        %v817 = vmul.f32 %v794, %v802
        %v818 = vmul.f32 %v795, %v802
        %v819 = vmul.f32 %v796, %v802
        %vm820 = vcmask 326656
        %v821 = vsel %vm820, %v804, 0.0
        %822 = vadd.xlane.f32.xlu0 %v821
        %v823 = vpop.xlane.xlu0 %822
        %v824 = vsel %vm820, %v805, 0.0
        %825 = vadd.xlane.f32.xlu0 %v824
        %v826 = vpop.xlane.xlu0 %825
        %v827 = vsel %vm820, %v806, 0.0
        %828 = vadd.xlane.f32.xlu0 %v827
        %v829 = vpop.xlane.xlu0 %828
        %v830 = vsel %vm820, %v807, 0.0
        %831 = vadd.xlane.f32.xlu0 %v830
        %v832 = vpop.xlane.xlu0 %831
        %v833 = vsel %vm820, %v808, 0.0
        %834 = vadd.xlane.f32.xlu0 %v833
        %v835 = vpop.xlane.xlu0 %834
        %v836 = vsel %vm820, %v809, 0.0
        %837 = vadd.xlane.f32.xlu0 %v836
        %v838 = vpop.xlane.xlu0 %837
        %v839 = vsel %vm820, %v810, 0.0
        %840 = vadd.xlane.f32.xlu0 %v839
        %v841 = vpop.xlane.xlu0 %840
        %v842 = vsel %vm820, %v811, 0.0
        %843 = vadd.xlane.f32.xlu0 %v842
        %v844 = vpop.xlane.xlu0 %843
        %v845 = vsel %vm820, %v812, 0.0
        %846 = vadd.xlane.f32.xlu0 %v845
        %v847 = vpop.xlane.xlu0 %846
        %v848 = vsel %vm820, %v813, 0.0
        %849 = vadd.xlane.f32.xlu0 %v848
        %v850 = vpop.xlane.xlu0 %849
        %v851 = vsel %vm820, %v814, 0.0
        %852 = vadd.xlane.f32.xlu0 %v851
        %v853 = vpop.xlane.xlu0 %852
        %v854 = vsel %vm820, %v815, 0.0
        %855 = vadd.xlane.f32.xlu0 %v854
        %v856 = vpop.xlane.xlu0 %855
        %v857 = vsel %vm820, %v816, 0.0
        %858 = vadd.xlane.f32.xlu0 %v857
        %v859 = vpop.xlane.xlu0 %858
        %v860 = vsel %vm820, %v817, 0.0
        %861 = vadd.xlane.f32.xlu0 %v860
        %v862 = vpop.xlane.xlu0 %861
        %v863 = vsel %vm820, %v818, 0.0
        %864 = vadd.xlane.f32.xlu0 %v863
        %v865 = vpop.xlane.xlu0 %864
        %v866 = vsel %vm820, %v819, 0.0
        %867 = vadd.xlane.f32.xlu0 %v866
        %v868 = vpop.xlane.xlu0 %867
        %v885 = vlaneseq
        %v886 = vand.u32 %v885, 127
        %v887 = vlaneseq
        %v888 = vshrl.u32 %v887, 7
        %v889 = vsub.s32 %v886, %v888
        %v890 = vrot.slane %v823, %v889
        %v891 = vadd.s32 %v886, 4294967288
        %v892 = vlaneseq
        %v893 = vshrl.u32 %v892, 7
        %v894 = vsub.s32 %v891, %v893
        %v895 = vrot.slane %v826, %v894
        %vm896 = vcmask 130112
        %v897 = vsel %vm896, %v895, %v890
        %v898 = vlaneseq
        %v899 = vshrl.u32 %v898, 7
        %v900 = vsub.s32 %v886, %v899
        %v901 = vrot.slane %v829, %v900
        %v902 = vlaneseq
        %v903 = vshrl.u32 %v902, 7
        %v904 = vsub.s32 %v891, %v903
        %v905 = vrot.slane %v832, %v904
        %v906 = vsel %vm896, %v905, %v901
        %v907 = vlaneseq
        %v908 = vshrl.u32 %v907, 7
        %v909 = vsub.s32 %v886, %v908
        %v910 = vrot.slane %v835, %v909
        %v911 = vlaneseq
        %v912 = vshrl.u32 %v911, 7
        %v913 = vsub.s32 %v891, %v912
        %v914 = vrot.slane %v838, %v913
        %v915 = vsel %vm896, %v914, %v910
        %v916 = vlaneseq
        %v917 = vshrl.u32 %v916, 7
        %v918 = vsub.s32 %v886, %v917
        %v919 = vrot.slane %v841, %v918
        %v920 = vlaneseq
        %v921 = vshrl.u32 %v920, 7
        %v922 = vsub.s32 %v891, %v921
        %v923 = vrot.slane %v844, %v922
        %v924 = vsel %vm896, %v923, %v919
        %v925 = vlaneseq
        %v926 = vshrl.u32 %v925, 7
        %v927 = vsub.s32 %v886, %v926
        %v928 = vrot.slane %v847, %v927
        %v929 = vlaneseq
        %v930 = vshrl.u32 %v929, 7
        %v931 = vsub.s32 %v891, %v930
        %v932 = vrot.slane %v850, %v931
        %v933 = vsel %vm896, %v932, %v928
        %v934 = vlaneseq
        %v935 = vshrl.u32 %v934, 7
        %v936 = vsub.s32 %v886, %v935
        %v937 = vrot.slane %v853, %v936
        %v938 = vlaneseq
        %v939 = vshrl.u32 %v938, 7
        %v940 = vsub.s32 %v891, %v939
        %v941 = vrot.slane %v856, %v940
        %v942 = vsel %vm896, %v941, %v937
        %v943 = vlaneseq
        %v944 = vshrl.u32 %v943, 7
        %v945 = vsub.s32 %v886, %v944
        %v946 = vrot.slane %v859, %v945
        %v947 = vlaneseq
        %v948 = vshrl.u32 %v947, 7
        %v949 = vsub.s32 %v891, %v948
        %v950 = vrot.slane %v862, %v949
        %v951 = vsel %vm896, %v950, %v946
        %v952 = vlaneseq
        %v953 = vshrl.u32 %v952, 7
        %v954 = vsub.s32 %v886, %v953
        %v955 = vrot.slane %v865, %v954
        %v956 = vlaneseq
        %v957 = vshrl.u32 %v956, 7
        %v958 = vsub.s32 %v891, %v957
        %v959 = vrot.slane %v868, %v958
        %v960 = vsel %vm896, %v959, %v955
        %vm961 = vcmask 1041409
        %v962 = vsel %vm961, %v906, %v897
        %vm963 = vcmask 1042434
        %v964 = vsel %vm963, %v915, %v962
        %vm965 = vcmask 1043459
        %v966 = vsel %vm965, %v924, %v964
        %vm967 = vcmask 1044484
        %v968 = vsel %vm967, %v933, %v966
        %vm969 = vcmask 1045509
        %v970 = vsel %vm969, %v942, %v968
        %vm971 = vcmask 1046534
        %v972 = vsel %vm971, %v951, %v970
        %vm973 = vcmask 1047559
        %v974 = vsel %vm973, %v960, %v972
        %vm976 = vcmask 130048
        %v977 = vsel %vm976, %v974, -inf
        %978 = vmax.xlane.f32.xlu0 %v977
        %v979 = vpop.xlane.xlu0 %978
        %v981 = vlaneseq
        %v982 = vshrl.u32 %v981, 7
        %v983 = vsub.s32 0, %v982
        %v984 = vrot.slane %v979, %v983
        %v985 = vlaneseq
        %v986 = vshrl.u32 %v985, 7
        %v987 = vsub.s32 1, %v986
        %v988 = vrot.slane %v979, %v987
        %v989 = vlaneseq
        %v990 = vshrl.u32 %v989, 7
        %v991 = vsub.s32 2, %v990
        %v992 = vrot.slane %v979, %v991
        %v993 = vlaneseq
        %v994 = vshrl.u32 %v993, 7
        %v995 = vsub.s32 3, %v994
        %v996 = vrot.slane %v979, %v995
        %v997 = vlaneseq
        %v998 = vshrl.u32 %v997, 7
        %v999 = vsub.s32 4, %v998
        %v1000 = vrot.slane %v979, %v999
        %v1001 = vlaneseq
        %v1002 = vshrl.u32 %v1001, 7
        %v1003 = vsub.s32 5, %v1002
        %v1004 = vrot.slane %v979, %v1003
        %v1005 = vlaneseq
        %v1006 = vshrl.u32 %v1005, 7
        %v1007 = vsub.s32 6, %v1006
        %v1008 = vrot.slane %v979, %v1007
        %v1009 = vlaneseq
        %v1010 = vshrl.u32 %v1009, 7
        %v1011 = vsub.s32 7, %v1010
        %v1012 = vrot.slane %v979, %v1011
        %v1021 = vsub.f32 %v823, %v984
        %v1022 = vsub.f32 %v826, %v984
        %v1023 = vsub.f32 %v829, %v988
        %v1024 = vsub.f32 %v832, %v988
        %v1025 = vsub.f32 %v835, %v992
        %v1026 = vsub.f32 %v838, %v992
        %v1027 = vsub.f32 %v841, %v996
        %v1028 = vsub.f32 %v844, %v996
        %v1029 = vsub.f32 %v847, %v1000
        %v1030 = vsub.f32 %v850, %v1000
        %v1031 = vsub.f32 %v853, %v1004
        %v1032 = vsub.f32 %v856, %v1004
        %v1033 = vsub.f32 %v859, %v1008
        %v1034 = vsub.f32 %v862, %v1008
        %v1035 = vsub.f32 %v865, %v1012
        %v1036 = vsub.f32 %v868, %v1012
        %v1037 = vmul.f32 %v1021, 1.442695
        %v1038 = vpow.pop %v1037
        %v1039 = vmul.f32 %v1022, 1.442695
        %v1040 = vpow.pop %v1039
        %v1041 = vmul.f32 %v1023, 1.442695
        %v1042 = vpow.pop %v1041
        %v1043 = vmul.f32 %v1024, 1.442695
        %v1044 = vpow.pop %v1043
        %v1045 = vmul.f32 %v1025, 1.442695
        %v1046 = vpow.pop %v1045
        %v1047 = vmul.f32 %v1026, 1.442695
        %v1048 = vpow.pop %v1047
        %v1049 = vmul.f32 %v1027, 1.442695
        %v1050 = vpow.pop %v1049
        %v1051 = vmul.f32 %v1028, 1.442695
        %v1052 = vpow.pop %v1051
        %v1053 = vmul.f32 %v1029, 1.442695
        %v1054 = vpow.pop %v1053
        %v1055 = vmul.f32 %v1030, 1.442695
        %v1056 = vpow.pop %v1055
        %v1057 = vmul.f32 %v1031, 1.442695
        %v1058 = vpow.pop %v1057
        %v1059 = vmul.f32 %v1032, 1.442695
        %v1060 = vpow.pop %v1059
        %v1061 = vmul.f32 %v1033, 1.442695
        %v1062 = vpow.pop %v1061
        %v1063 = vmul.f32 %v1034, 1.442695
        %v1064 = vpow.pop %v1063
        %v1065 = vmul.f32 %v1035, 1.442695
        %v1066 = vpow.pop %v1065
        %v1067 = vmul.f32 %v1036, 1.442695
        %v1068 = vpow.pop %v1067
        %1085 = vset.pattern.permute.xlu0 0
        %1086 = vperm.xlu0 %1085, %v1038
        %v1087 = vpop.permute.xlu0 %1086
        %1088 = vset.pattern.permute.xlu0 0
        %1089 = vperm.xlu0 %1088, %v1040
        %v1090 = vpop.permute.xlu0 %1089
        %1091 = vset.pattern.permute.xlu0 0
        %1092 = vperm.xlu0 %1091, %v1042
        %v1093 = vpop.permute.xlu0 %1092
        %1094 = vset.pattern.permute.xlu0 0
        %1095 = vperm.xlu0 %1094, %v1044
        %v1096 = vpop.permute.xlu0 %1095
        %1097 = vset.pattern.permute.xlu0 0
        %1098 = vperm.xlu0 %1097, %v1046
        %v1099 = vpop.permute.xlu0 %1098
        %1100 = vset.pattern.permute.xlu0 0
        %1101 = vperm.xlu0 %1100, %v1048
        %v1102 = vpop.permute.xlu0 %1101
        %1103 = vset.pattern.permute.xlu0 0
        %1104 = vperm.xlu0 %1103, %v1050
        %v1105 = vpop.permute.xlu0 %1104
        %1106 = vset.pattern.permute.xlu0 0
        %1107 = vperm.xlu0 %1106, %v1052
        %v1108 = vpop.permute.xlu0 %1107
        %1109 = vset.pattern.permute.xlu0 0
        %1110 = vperm.xlu0 %1109, %v1054
        %v1111 = vpop.permute.xlu0 %1110
        %1112 = vset.pattern.permute.xlu0 0
        %1113 = vperm.xlu0 %1112, %v1056
        %v1114 = vpop.permute.xlu0 %1113
        %1115 = vset.pattern.permute.xlu0 0
        %1116 = vperm.xlu0 %1115, %v1058
        %v1117 = vpop.permute.xlu0 %1116
        %1118 = vset.pattern.permute.xlu0 0
        %1119 = vperm.xlu0 %1118, %v1060
        %v1120 = vpop.permute.xlu0 %1119
        %1121 = vset.pattern.permute.xlu0 0
        %1122 = vperm.xlu0 %1121, %v1062
        %v1123 = vpop.permute.xlu0 %1122
        %1124 = vset.pattern.permute.xlu0 0
        %1125 = vperm.xlu0 %1124, %v1064
        %v1126 = vpop.permute.xlu0 %1125
        %1127 = vset.pattern.permute.xlu0 0
        %1128 = vperm.xlu0 %1127, %v1066
        %v1129 = vpop.permute.xlu0 %1128
        %1130 = vset.pattern.permute.xlu0 0
        %1131 = vperm.xlu0 %1130, %v1068
        %v1132 = vpop.permute.xlu0 %1131
        %v1133 = vlaneseq
        %v1134 = vshrl.u32 %v1133, 7
        %v1135 = vsub.s32 %v886, %v1134
        %v1136 = vrot.slane %v1087, %v1135
        %v1137 = vlaneseq
        %v1138 = vshrl.u32 %v1137, 7
        %v1139 = vsub.s32 %v891, %v1138
        %v1140 = vrot.slane %v1090, %v1139
        %v1141 = vsel %vm896, %v1140, %v1136
        %v1142 = vlaneseq
        %v1143 = vshrl.u32 %v1142, 7
        %v1144 = vsub.s32 %v886, %v1143
        %v1145 = vrot.slane %v1093, %v1144
        %v1146 = vlaneseq
        %v1147 = vshrl.u32 %v1146, 7
        %v1148 = vsub.s32 %v891, %v1147
        %v1149 = vrot.slane %v1096, %v1148
        %v1150 = vsel %vm896, %v1149, %v1145
        %v1151 = vlaneseq
        %v1152 = vshrl.u32 %v1151, 7
        %v1153 = vsub.s32 %v886, %v1152
        %v1154 = vrot.slane %v1099, %v1153
        %v1155 = vlaneseq
        %v1156 = vshrl.u32 %v1155, 7
        %v1157 = vsub.s32 %v891, %v1156
        %v1158 = vrot.slane %v1102, %v1157
        %v1159 = vsel %vm896, %v1158, %v1154
        %v1160 = vlaneseq
        %v1161 = vshrl.u32 %v1160, 7
        %v1162 = vsub.s32 %v886, %v1161
        %v1163 = vrot.slane %v1105, %v1162
        %v1164 = vlaneseq
        %v1165 = vshrl.u32 %v1164, 7
        %v1166 = vsub.s32 %v891, %v1165
        %v1167 = vrot.slane %v1108, %v1166
        %v1168 = vsel %vm896, %v1167, %v1163
        %v1169 = vlaneseq
        %v1170 = vshrl.u32 %v1169, 7
        %v1171 = vsub.s32 %v886, %v1170
        %v1172 = vrot.slane %v1111, %v1171
        %v1173 = vlaneseq
        %v1174 = vshrl.u32 %v1173, 7
        %v1175 = vsub.s32 %v891, %v1174
        %v1176 = vrot.slane %v1114, %v1175
        %v1177 = vsel %vm896, %v1176, %v1172
        %v1178 = vlaneseq
        %v1179 = vshrl.u32 %v1178, 7
        %v1180 = vsub.s32 %v886, %v1179
        %v1181 = vrot.slane %v1117, %v1180
        %v1182 = vlaneseq
        %v1183 = vshrl.u32 %v1182, 7
        %v1184 = vsub.s32 %v891, %v1183
        %v1185 = vrot.slane %v1120, %v1184
        %v1186 = vsel %vm896, %v1185, %v1181
        %v1187 = vlaneseq
        %v1188 = vshrl.u32 %v1187, 7
        %v1189 = vsub.s32 %v886, %v1188
        %v1190 = vrot.slane %v1123, %v1189
        %v1191 = vlaneseq
        %v1192 = vshrl.u32 %v1191, 7
        %v1193 = vsub.s32 %v891, %v1192
        %v1194 = vrot.slane %v1126, %v1193
        %v1195 = vsel %vm896, %v1194, %v1190
        %v1196 = vlaneseq
        %v1197 = vshrl.u32 %v1196, 7
        %v1198 = vsub.s32 %v886, %v1197
        %v1199 = vrot.slane %v1129, %v1198
        %v1200 = vlaneseq
        %v1201 = vshrl.u32 %v1200, 7
        %v1202 = vsub.s32 %v891, %v1201
        %v1203 = vrot.slane %v1132, %v1202
        %v1204 = vsel %vm896, %v1203, %v1199
        %v1205 = vsel %vm961, %v1150, %v1141
        %v1206 = vsel %vm963, %v1159, %v1205
        %v1207 = vsel %vm965, %v1168, %v1206
        %v1208 = vsel %vm967, %v1177, %v1207
        %v1209 = vsel %vm969, %v1186, %v1208
        %v1210 = vsel %vm971, %v1195, %v1209
        %v1211 = vsel %vm973, %v1204, %v1210
        %v1213 = vsel %vm976, %v1211, 0.0
        %1214 = vadd.xlane.f32.xlu0 %v1213
        %v1215 = vpop.xlane.xlu0 %1214
        %v1216 = vrcp.pop %v1215
        %v1218 = vlaneseq
        %v1219 = vshrl.u32 %v1218, 7
        %v1220 = vsub.s32 0, %v1219
        %v1221 = vrot.slane %v1216, %v1220
        %v1222 = vlaneseq
        %v1223 = vshrl.u32 %v1222, 7
        %v1224 = vsub.s32 1, %v1223
        %v1225 = vrot.slane %v1216, %v1224
        %v1226 = vlaneseq
        %v1227 = vshrl.u32 %v1226, 7
        %v1228 = vsub.s32 2, %v1227
        %v1229 = vrot.slane %v1216, %v1228
        %v1230 = vlaneseq
        %v1231 = vshrl.u32 %v1230, 7
        %v1232 = vsub.s32 3, %v1231
        %v1233 = vrot.slane %v1216, %v1232
        %v1234 = vlaneseq
        %v1235 = vshrl.u32 %v1234, 7
        %v1236 = vsub.s32 4, %v1235
        %v1237 = vrot.slane %v1216, %v1236
        %v1238 = vlaneseq
        %v1239 = vshrl.u32 %v1238, 7
        %v1240 = vsub.s32 5, %v1239
        %v1241 = vrot.slane %v1216, %v1240
        %v1242 = vlaneseq
        %v1243 = vshrl.u32 %v1242, 7
        %v1244 = vsub.s32 6, %v1243
        %v1245 = vrot.slane %v1216, %v1244
        %v1246 = vlaneseq
        %v1247 = vshrl.u32 %v1246, 7
        %v1248 = vsub.s32 7, %v1247
        %v1249 = vrot.slane %v1216, %v1248
        %v1258 = vmul.f32 %v1038, %v1221
        %v1259 = vmul.f32 %v1040, %v1221
        %v1260 = vmul.f32 %v1042, %v1225
        %v1261 = vmul.f32 %v1044, %v1225
        %v1262 = vmul.f32 %v1046, %v1229
        %v1263 = vmul.f32 %v1048, %v1229
        %v1264 = vmul.f32 %v1050, %v1233
        %v1265 = vmul.f32 %v1052, %v1233
        %v1266 = vmul.f32 %v1054, %v1237
        %v1267 = vmul.f32 %v1056, %v1237
        %v1268 = vmul.f32 %v1058, %v1241
        %v1269 = vmul.f32 %v1060, %v1241
        %v1270 = vmul.f32 %v1062, %v1245
        %v1271 = vmul.f32 %v1064, %v1245
        %v1272 = vmul.f32 %v1066, %v1249
        %v1273 = vmul.f32 %v1068, %v1249
        %1275 = vset.pattern.permute.xlu0 0
        %1276 = vperm.xlu0 %1275, %v1258
        %v1277 = vpop.permute.xlu0 %1276
        %1280 = vset.pattern.permute.xlu0 0
        %1281 = vperm.xlu0 %1280, %v1259
        %v1282 = vpop.permute.xlu0 %1281
        %1285 = vset.pattern.permute.xlu0 0
        %1286 = vperm.xlu0 %1285, %v1260
        %v1287 = vpop.permute.xlu0 %1286
        %1290 = vset.pattern.permute.xlu0 0
        %1291 = vperm.xlu0 %1290, %v1261
        %v1292 = vpop.permute.xlu0 %1291
        %1295 = vset.pattern.permute.xlu0 0
        %1296 = vperm.xlu0 %1295, %v1262
        %v1297 = vpop.permute.xlu0 %1296
        %1300 = vset.pattern.permute.xlu0 0
        %1301 = vperm.xlu0 %1300, %v1263
        %v1302 = vpop.permute.xlu0 %1301
        %1305 = vset.pattern.permute.xlu0 0
        %1306 = vperm.xlu0 %1305, %v1264
        %v1307 = vpop.permute.xlu0 %1306
        %1310 = vset.pattern.permute.xlu0 0
        %1311 = vperm.xlu0 %1310, %v1265
        %v1312 = vpop.permute.xlu0 %1311
        %1315 = vset.pattern.permute.xlu0 0
        %1316 = vperm.xlu0 %1315, %v1266
        %v1317 = vpop.permute.xlu0 %1316
        %1320 = vset.pattern.permute.xlu0 0
        %1321 = vperm.xlu0 %1320, %v1267
        %v1322 = vpop.permute.xlu0 %1321
        %1325 = vset.pattern.permute.xlu0 0
        %1326 = vperm.xlu0 %1325, %v1268
        %v1327 = vpop.permute.xlu0 %1326
        %1330 = vset.pattern.permute.xlu0 0
        %1331 = vperm.xlu0 %1330, %v1269
        %v1332 = vpop.permute.xlu0 %1331
        %1335 = vset.pattern.permute.xlu0 0
        %1336 = vperm.xlu0 %1335, %v1270
        %v1337 = vpop.permute.xlu0 %1336
        %1340 = vset.pattern.permute.xlu0 0
        %1341 = vperm.xlu0 %1340, %v1271
        %v1342 = vpop.permute.xlu0 %1341
        %1345 = vset.pattern.permute.xlu0 0
        %1346 = vperm.xlu0 %1345, %v1272
        %v1347 = vpop.permute.xlu0 %1346
        %1350 = vset.pattern.permute.xlu0 0
        %1351 = vperm.xlu0 %1350, %v1273
        %v1352 = vpop.permute.xlu0 %1351
        %v1354 = vmul.f32 %v376, %v1277
        %v1355 = vmul.f32 %v377, %v1282
        %v1356 = vmul.f32 %v378, %v1287
        %v1357 = vmul.f32 %v379, %v1292
        %v1358 = vmul.f32 %v380, %v1297
        %v1359 = vmul.f32 %v381, %v1302
        %v1360 = vmul.f32 %v382, %v1307
        %v1361 = vmul.f32 %v383, %v1312
        %v1362 = vmul.f32 %v384, %v1317
        %v1363 = vmul.f32 %v385, %v1322
        %v1364 = vmul.f32 %v386, %v1327
        %v1365 = vmul.f32 %v387, %v1332
        %v1366 = vmul.f32 %v388, %v1337
        %v1367 = vmul.f32 %v389, %v1342
        %v1368 = vmul.f32 %v390, %v1347
        %v1369 = vmul.f32 %v391, %v1352
        %v1370 = vsel %vm396, %v1354, 0.0
        %v1371 = vsel %vm396, %v1355, 0.0
        %v1372 = vadd.f32 %v1370, %v1371
        %v1373 = vrot.slane %v1372, 4
        %v1374 = vadd.f32 %v1372, %v1373
        %v1375 = vrot.slane %v1374, 2
        %v1376 = vadd.f32 %v1374, %v1375
        %v1377 = vrot.slane %v1376, 1
        %v1378 = vadd.f32 %v1376, %v1377
        %v1379 = vsel %vm396, %v1356, 0.0
        %v1380 = vsel %vm396, %v1357, 0.0
        %v1381 = vadd.f32 %v1379, %v1380
        %v1382 = vrot.slane %v1381, 4
        %v1383 = vadd.f32 %v1381, %v1382
        %v1384 = vrot.slane %v1383, 2
        %v1385 = vadd.f32 %v1383, %v1384
        %v1386 = vrot.slane %v1385, 1
        %v1387 = vadd.f32 %v1385, %v1386
        %v1388 = vsel %vm396, %v1358, 0.0
        %v1389 = vsel %vm396, %v1359, 0.0
        %v1390 = vadd.f32 %v1388, %v1389
        %v1391 = vrot.slane %v1390, 4
        %v1392 = vadd.f32 %v1390, %v1391
        %v1393 = vrot.slane %v1392, 2
        %v1394 = vadd.f32 %v1392, %v1393
        %v1395 = vrot.slane %v1394, 1
        %v1396 = vadd.f32 %v1394, %v1395
        %v1397 = vsel %vm396, %v1360, 0.0
        %v1398 = vsel %vm396, %v1361, 0.0
        %v1399 = vadd.f32 %v1397, %v1398
        %v1400 = vrot.slane %v1399, 4
        %v1401 = vadd.f32 %v1399, %v1400
        %v1402 = vrot.slane %v1401, 2
        %v1403 = vadd.f32 %v1401, %v1402
        %v1404 = vrot.slane %v1403, 1
        %v1405 = vadd.f32 %v1403, %v1404
        %v1406 = vsel %vm396, %v1362, 0.0
        %v1407 = vsel %vm396, %v1363, 0.0
        %v1408 = vadd.f32 %v1406, %v1407
        %v1409 = vrot.slane %v1408, 4
        %v1410 = vadd.f32 %v1408, %v1409
        %v1411 = vrot.slane %v1410, 2
        %v1412 = vadd.f32 %v1410, %v1411
        %v1413 = vrot.slane %v1412, 1
        %v1414 = vadd.f32 %v1412, %v1413
        %v1415 = vsel %vm396, %v1364, 0.0
        %v1416 = vsel %vm396, %v1365, 0.0
        %v1417 = vadd.f32 %v1415, %v1416
        %v1418 = vrot.slane %v1417, 4
        %v1419 = vadd.f32 %v1417, %v1418
        %v1420 = vrot.slane %v1419, 2
        %v1421 = vadd.f32 %v1419, %v1420
        %v1422 = vrot.slane %v1421, 1
        %v1423 = vadd.f32 %v1421, %v1422
        %v1424 = vsel %vm396, %v1366, 0.0
        %v1425 = vsel %vm396, %v1367, 0.0
        %v1426 = vadd.f32 %v1424, %v1425
        %v1427 = vrot.slane %v1426, 4
        %v1428 = vadd.f32 %v1426, %v1427
        %v1429 = vrot.slane %v1428, 2
        %v1430 = vadd.f32 %v1428, %v1429
        %v1431 = vrot.slane %v1430, 1
        %v1432 = vadd.f32 %v1430, %v1431
        %v1433 = vsel %vm396, %v1368, 0.0
        %v1434 = vsel %vm396, %v1369, 0.0
        %v1435 = vadd.f32 %v1433, %v1434
        %v1436 = vrot.slane %v1435, 4
        %v1437 = vadd.f32 %v1435, %v1436
        %v1438 = vrot.slane %v1437, 2
        %v1439 = vadd.f32 %v1437, %v1438
        %v1440 = vrot.slane %v1439, 1
        %v1441 = vadd.f32 %v1439, %v1440
        %v1450 = vsel %vm961, %v1387, %v1378
        %v1451 = vsel %vm963, %v1396, %v1450
        %v1452 = vsel %vm965, %v1405, %v1451
        %v1453 = vsel %vm967, %v1414, %v1452
        %v1454 = vsel %vm969, %v1423, %v1453
        %v1455 = vsel %vm971, %v1432, %v1454
        %v1456 = vsel %vm973, %v1441, %v1455
        %1458 = vst.msk [vmem:[%s367] sm:$0xff] %vm396, %v1456
        %v1459 = vlaneseq
        %v1460 = vshrl.u32 %v1459, 7
        %v1461 = vsub.s32 %v886, %v1460
        %v1462 = vrot.slane %v1277, %v1461
        %v1463 = vlaneseq
        %v1464 = vshrl.u32 %v1463, 7
        %v1465 = vsub.s32 %v891, %v1464
        %v1466 = vrot.slane %v1282, %v1465
        %v1467 = vsel %vm896, %v1466, %v1462
        %v1468 = vlaneseq
        %v1469 = vshrl.u32 %v1468, 7
        %v1470 = vsub.s32 %v886, %v1469
        %v1471 = vrot.slane %v1287, %v1470
        %v1472 = vlaneseq
        %v1473 = vshrl.u32 %v1472, 7
        %v1474 = vsub.s32 %v891, %v1473
        %v1475 = vrot.slane %v1292, %v1474
        %v1476 = vsel %vm896, %v1475, %v1471
        %v1477 = vlaneseq
        %v1478 = vshrl.u32 %v1477, 7
        %v1479 = vsub.s32 %v886, %v1478
        %v1480 = vrot.slane %v1297, %v1479
        %v1481 = vlaneseq
        %v1482 = vshrl.u32 %v1481, 7
        %v1483 = vsub.s32 %v891, %v1482
        %v1484 = vrot.slane %v1302, %v1483
        %v1485 = vsel %vm896, %v1484, %v1480
        %v1486 = vlaneseq
        %v1487 = vshrl.u32 %v1486, 7
        %v1488 = vsub.s32 %v886, %v1487
        %v1489 = vrot.slane %v1307, %v1488
        %v1490 = vlaneseq
        %v1491 = vshrl.u32 %v1490, 7
        %v1492 = vsub.s32 %v891, %v1491
        %v1493 = vrot.slane %v1312, %v1492
        %v1494 = vsel %vm896, %v1493, %v1489
        %v1495 = vlaneseq
        %v1496 = vshrl.u32 %v1495, 7
        %v1497 = vsub.s32 %v886, %v1496
        %v1498 = vrot.slane %v1317, %v1497
        %v1499 = vlaneseq
        %v1500 = vshrl.u32 %v1499, 7
        %v1501 = vsub.s32 %v891, %v1500
        %v1502 = vrot.slane %v1322, %v1501
        %v1503 = vsel %vm896, %v1502, %v1498
        %v1504 = vlaneseq
        %v1505 = vshrl.u32 %v1504, 7
        %v1506 = vsub.s32 %v886, %v1505
        %v1507 = vrot.slane %v1327, %v1506
        %v1508 = vlaneseq
        %v1509 = vshrl.u32 %v1508, 7
        %v1510 = vsub.s32 %v891, %v1509
        %v1511 = vrot.slane %v1332, %v1510
        %v1512 = vsel %vm896, %v1511, %v1507
        %v1513 = vlaneseq
        %v1514 = vshrl.u32 %v1513, 7
        %v1515 = vsub.s32 %v886, %v1514
        %v1516 = vrot.slane %v1337, %v1515
        %v1517 = vlaneseq
        %v1518 = vshrl.u32 %v1517, 7
        %v1519 = vsub.s32 %v891, %v1518
        %v1520 = vrot.slane %v1342, %v1519
        %v1521 = vsel %vm896, %v1520, %v1516
        %v1522 = vlaneseq
        %v1523 = vshrl.u32 %v1522, 7
        %v1524 = vsub.s32 %v886, %v1523
        %v1525 = vrot.slane %v1347, %v1524
        %v1526 = vlaneseq
        %v1527 = vshrl.u32 %v1526, 7
        %v1528 = vsub.s32 %v891, %v1527
        %v1529 = vrot.slane %v1352, %v1528
        %v1530 = vsel %vm896, %v1529, %v1525
        %v1531 = vsel %vm961, %v1476, %v1467
        %v1532 = vsel %vm963, %v1485, %v1531
        %v1533 = vsel %vm965, %v1494, %v1532
        %v1534 = vsel %vm967, %v1503, %v1533
        %v1535 = vsel %vm969, %v1512, %v1534
        %v1536 = vsel %vm971, %v1521, %v1535
        %v1537 = vsel %vm973, %v1530, %v1536
        %1539 = vst.msk [vmem:[%s374] sm:$0xff] %vm976, %v1537
        %s1540 = sand.u32 %s176, 1
        %s1541 = scalar_lea.sflag [#allocation4], %s1540
        %s1542 = sand.u32 %s176, 1
        %s1543 = smul.addr %s1542, 8
        %s1544 = scalar_lea.vmem [#allocation10], %s1543
        %s1545 = sand.u32 %s202, 1
        %s1546 = scalar_lea.sflag [#allocation12], %s1545
        %s1547 = sand.u32 %s202, 1
        %s1548 = smul.addr %s1547, 8
        %s1549 = scalar_lea.vmem [#allocation11], %s1548
        // Predicated region
        $region61: #{tpu_custom_call.1} parent=43 // pred_check
          %p1550 = pneg %p186
        $region62: #{tpu_custom_call.1} parent=43 // pred_check_branch
          %1552 = sbr.rel (%p1550) target = $region64
        $region63: #{tpu_custom_call.1} parent=43 // pred_region
          %s1554 = ssub.s32 128, 128
          %1555 = vsyncadd %s1541, %s1554
          %s1556 = smul.addr %s32, 128
          %s1557 = scalar_lea.hbm %s6, %s1556
          %s1559 = sshll.u32 %s1544, 4
          %s1560 = int_to_ptr.vmem [resolvable:$true] %s1559
          %1562 = dma.vmem_to_hbm [thread:$0]  %s1560, 128, %s1557, %s1541
        $region64: #{tpu_custom_call.1} parent=43 // pred_fallthru
          _
        // Predicated region
        $region65: #{tpu_custom_call.1} parent=43 // pred_check
          %p1563 = pneg %p212
        $region66: #{tpu_custom_call.1} parent=43 // pred_check_branch
          %1565 = sbr.rel (%p1563) target = $region68
        $region67: #{tpu_custom_call.1} parent=43 // pred_region
          %s1567 = ssub.s32 128, 128
          %1568 = vsyncadd %s1546, %s1567
          %s1569 = smul.addr %s32, 128
          %s1570 = scalar_lea.hbm %s7, %s1569
          %s1572 = sshll.u32 %s1549, 4
          %s1573 = int_to_ptr.vmem [resolvable:$true] %s1572
          %1575 = dma.vmem_to_hbm [thread:$0]  %s1573, 128, %s1570, %s1546
        $region68: #{tpu_custom_call.1} parent=43 // pred_fallthru
          _
      $region44: #{tpu_custom_call.1} parent=5 // pred_fallthru
        _
      %p1576 = scmp.le.s32.totalorder 2, %s27
      // Predicated region
      $region69: #{tpu_custom_call.1} parent=5 // pred_check
        %p1577 = pneg %p1576
      $region70: #{tpu_custom_call.1} parent=5 // pred_check_branch
        %1579 = sbr.rel (%p1577) target = $region72
      $region71: #{tpu_custom_call.1} parent=5 // pred_region
        %s1580 = ssub.s32 %s27, 2
        // Predicated region
        $region73: #{tpu_custom_call.1} parent=71 // pred_check
          %p1581 = pneg %p192
        $region74: #{tpu_custom_call.1} parent=71 // pred_check_branch
          %1583 = sbr.rel (%p1581) target = $region76
        $region75: #{tpu_custom_call.1} parent=71 // pred_region
          %s1584 = sand.u32 %s177, 1
          %s1585 = scalar_lea.sflag [#allocation4], %s1584
          %s1586 = sand.u32 %s177, 1
          %s1587 = smul.addr %s1586, 8
          %s1588 = scalar_lea.vmem [#allocation10], %s1587
          %1589 = dma.done %s1585, 128
        $region76: #{tpu_custom_call.1} parent=71 // pred_fallthru
          _
        // Predicated region
        $region77: #{tpu_custom_call.1} parent=71 // pred_check
          %p1590 = pneg %p218
        $region78: #{tpu_custom_call.1} parent=71 // pred_check_branch
          %1592 = sbr.rel (%p1590) target = $region80
        $region79: #{tpu_custom_call.1} parent=71 // pred_region
          %s1593 = sand.u32 %s203, 1
          %s1594 = scalar_lea.sflag [#allocation12], %s1593
          %s1595 = sand.u32 %s203, 1
          %s1596 = smul.addr %s1595, 8
          %s1597 = scalar_lea.vmem [#allocation11], %s1596
          %1598 = dma.done %s1594, 128
        $region80: #{tpu_custom_call.1} parent=71 // pred_fallthru
          _
      $region72: #{tpu_custom_call.1} parent=5 // pred_fallthru
        _
    $region6: #{tpu_custom_call.1} parent=1 // loop_footer
      %s31 = sadd.s32 1, %s27
    $region7: #{tpu_custom_call.1} parent=1 // loop_footer_branch
      %26 = sbr.rel target = $region3
    $region8: #{tpu_custom_call.1} parent=1 // loop_exit
      _
    %1599 = vsyncpa [#allocation3], 1
    %s1600 = scalar_lea.sflag [#allocation3], 1
    %1601 = vsyncpa %s1600, 1
    %1602 = vsyncpa [#allocation6], 1
    %s1603 = scalar_lea.sflag [#allocation6], 1
    %1604 = vsyncpa %s1603, 1
    %1605 = vsyncpa [#allocation9], 1
    %1606 = vsyncpa [#allocation4], 1
    %s1607 = scalar_lea.sflag [#allocation4], 1
    %1608 = vsyncpa %s1607, 1
    %1609 = vsyncpa [#allocation12], 1
    %s1610 = scalar_lea.sflag [#allocation12], 1
    %1611 = vsyncpa %s1610, 1

// kernel: tpu_custom_call.1
$region0: #{tpu_custom_call.1}
  #allocation0 [shape = 'u32[]', space=smem, size = 0x4, offset = 0x4, fixed_abs, tag = 'smem constant byte address 0x4 - core index']
  #allocation1 [shape = 'u32[144,128]{1,0:T(1,128)}', space=vmem, size = 0x12000, scoped, tag = 'internal scratch']
  %s0 = inlined_call_operand.hbm [shape: f32[16,16,32], index: 0, kind: input, shape index: {}]
  %s1 = inlined_call_operand.hbm [shape: f32[16,24], index: 1, kind: input, shape index: {}]
  %s2 = inlined_call_operand.hbm [shape: f32[32,40], index: 2, kind: input, shape index: {}]
  %s3 = inlined_call_operand.hbm [shape: f32[24,40], index: 3, kind: input, shape index: {}]
  %s4 = inlined_call_operand.vmem [shape: f32[1,40], index: 4, kind: input, shape index: {}]
  %s5 = inlined_call_operand.vmem [shape: f32[1,40], index: 5, kind: input, shape index: {}]
  %s6 = inlined_call_operand.hbm [shape: f32[16,32], index: 6, kind: output, shape index: {0}]
  %s7 = inlined_call_operand.hbm [shape: f32[16,16], index: 7, kind: output, shape index: {1}]
  %8 = xla_tuple %s6, %s7
  %s9 = sld [smem:[#allocation0]]
  $region81: #{tpu_custom_call.1} parent=0
    _
  %s11 = ssub.s32 1, %s9
  %s12 = scalar_select 0, %s11, %s9
  $region1: #{tpu_custom_call.1} parent=0
    #allocation2 [shape = 'u8[131072]{0}', space=vmem, size = 0x20000, scoped, tag = 'input window, operand 0']
    #allocation3 [shape = 's32[2]{0}', space=sflag, size = 0x8, scoped, tag = 'scoped memory for tpu_custom_call.1']
    #allocation4 [shape = 's32[2]{0}', space=sflag, size = 0x8, scoped, tag = 'scoped memory for tpu_custom_call.1']
    #allocation5 [shape = 'u8[8192]{0}', space=vmem, size = 0x2000, scoped, tag = 'input window, operand 1']
    #allocation6 [shape = 's32[2]{0}', space=sflag, size = 0x8, scoped, tag = 'scoped memory for tpu_custom_call.1']
    #allocation7 [shape = 'u8[16384]{0}', space=vmem, size = 0x4000, scoped, tag = 'input window, operand 2, single buffered']
    #allocation8 [shape = 'u8[12288]{0}', space=vmem, size = 0x3000, scoped, tag = 'input window, operand 3, single buffered']
    #allocation9 [shape = 's32[1]{0}', space=sflag, size = 0x4, scoped, tag = 'scoped memory for tpu_custom_call.1']
    #allocation10 [shape = 'u8[8192]{0}', space=vmem, size = 0x2000, scoped, tag = 'output window, operand 0']
    #allocation11 [shape = 'u8[8192]{0}', space=vmem, size = 0x2000, scoped, tag = 'output window, operand 1']
    #allocation12 [shape = 's32[2]{0}', space=sflag, size = 0x8, scoped, tag = 'scoped memory for tpu_custom_call.1']
    %13 = vsyncpa [#allocation3], 0
    %s14 = scalar_lea.sflag [#allocation3], 1
    %15 = vsyncpa %s14, 0
    %16 = vsyncpa [#allocation6], 0
    %s17 = scalar_lea.sflag [#allocation6], 1
    %18 = vsyncpa %s17, 0
    %19 = vsyncpa [#allocation9], 0
    %20 = vsyncpa [#allocation4], 0
    %s21 = scalar_lea.sflag [#allocation4], 1
    %22 = vsyncpa %s21, 0
    %23 = vsyncpa [#allocation12], 0
    %s24 = scalar_lea.sflag [#allocation12], 1
    %25 = vsyncpa %s24, 0
    loop: start=0, step=1, limit=4
    $region2: #{tpu_custom_call.1} parent=1 // loop_pre_header
      _
    $region3: #{tpu_custom_call.1} parent=1 // loop_header
      %s27 = sphi 0, %s31
      %p28 = scmp.ge.s32.totalorder %s27, 4
      %s37 = sphi 0, %s39
      %s40 = sphi 0, %s37
      %s41 = sphi 0, %s40
      %s57 = sphi 0, %s41
      %s63 = sphi 0, %s65
      %s66 = sphi 0, %s63
      %s67 = sphi 0, %s66
      %s83 = sphi 0, %s67
      %s87 = sphi 0, %s87
      %s89 = sphi 0, %s87
      %s90 = sphi 0, %s89
      %s104 = sphi 0, %s90
      %s108 = sphi 0, %s108
      %s110 = sphi 0, %s108
      %s111 = sphi 0, %s110
      %s125 = sphi 0, %s111
      %s129 = sphi 0, %s129
      %s131 = sphi 0, %s129
      %s132 = sphi 0, %s131
      %s146 = sphi 0, %s132
      %s150 = sphi 0, %s150
      %s152 = sphi 0, %s150
      %s153 = sphi 0, %s152
      %s167 = sphi 0, %s153
      %s173 = sphi 0, %s175
      %s176 = sphi 0, %s173
      %s177 = sphi 0, %s176
      %s193 = sphi 0, %s177
      %s199 = sphi 0, %s201
      %s202 = sphi 0, %s199
      %s203 = sphi 0, %s202
      %s219 = sphi 0, %s203
    $region4: #{tpu_custom_call.1} parent=1 // loop_header_branch
      %30 = sbr.rel (%p28) target = $region8
    $region5: #{tpu_custom_call.1} parent=1 // loop_body
      %s32 = ssub.s32 %s27, 1
      %s33 = ssub.s32 %s27, 2
      %s34 = sadd.s32 %s27, 1
      %s35 = ssub.s32 %s27, %s34
      %p36 = scmp.eq.s32.totalorder %s35, 0
      %s38 = sadd.s32 %s37, 1
      %s39 = scalar_select %p36, %s37, %s38
      %p42 = pneg %p36
      %p43 = scmp.eq.s32.totalorder %s27, 1
      %p44 = por %p42, %p43
      %p45 = scmp.ne.s32.totalorder %s37, %s40
      %p46 = scmp.eq.s32.totalorder %s27, 0
      %p47 = por %p45, %p46
      %p48 = scmp.ne.s32.totalorder %s37, %s40
      %p49 = scmp.eq.s32.totalorder %s32, 1
      %p50 = por %p48, %p49
      %p51 = scmp.ne.s32.totalorder %s40, %s41
      %p52 = scmp.eq.s32.totalorder %s32, 0
      %p53 = por %p51, %p52
      %p54 = scmp.ne.s32.totalorder %s40, %s41
      %p55 = scmp.eq.s32.totalorder %s33, 1
      %p56 = por %p54, %p55
      %p58 = scmp.ne.s32.totalorder %s41, %s57
      %p59 = scmp.eq.s32.totalorder %s33, 0
      %p60 = por %p58, %p59
      %s61 = ssub.s32 %s27, %s34
      %p62 = scmp.eq.s32.totalorder %s61, 0
      %s64 = sadd.s32 %s63, 1
      %s65 = scalar_select %p62, %s63, %s64
      %p68 = pneg %p62
      %p69 = scmp.eq.s32.totalorder %s27, 1
      %p70 = por %p68, %p69
      %p71 = scmp.ne.s32.totalorder %s63, %s66
      %p72 = scmp.eq.s32.totalorder %s27, 0
      %p73 = por %p71, %p72
      %p74 = scmp.ne.s32.totalorder %s63, %s66
      %p75 = scmp.eq.s32.totalorder %s32, 1
      %p76 = por %p74, %p75
      %p77 = scmp.ne.s32.totalorder %s66, %s67
      %p78 = scmp.eq.s32.totalorder %s32, 0
      %p79 = por %p77, %p78
      %p80 = scmp.ne.s32.totalorder %s66, %s67
      %p81 = scmp.eq.s32.totalorder %s33, 1
      %p82 = por %p80, %p81
      %p84 = scmp.ne.s32.totalorder %s67, %s83
      %p85 = scmp.eq.s32.totalorder %s33, 0
      %p86 = por %p84, %p85
      %s88 = sadd.s32 %s87, 1
      %p91 = scmp.eq.s32.totalorder %s27, 1
      %p92 = scmp.ne.s32.totalorder %s87, %s89
      %p93 = scmp.eq.s32.totalorder %s27, 0
      %p94 = por %p92, %p93
      %p95 = scmp.ne.s32.totalorder %s87, %s89
      %p96 = scmp.eq.s32.totalorder %s32, 1
      %p97 = por %p95, %p96
      %p98 = scmp.ne.s32.totalorder %s89, %s90
      %p99 = scmp.eq.s32.totalorder %s32, 0
      %p100 = por %p98, %p99
      %p101 = scmp.ne.s32.totalorder %s89, %s90
      %p102 = scmp.eq.s32.totalorder %s33, 1
      %p103 = por %p101, %p102
      %p105 = scmp.ne.s32.totalorder %s90, %s104
      %p106 = scmp.eq.s32.totalorder %s33, 0
      %p107 = por %p105, %p106
      %s109 = sadd.s32 %s108, 1
      %p112 = scmp.eq.s32.totalorder %s27, 1
      %p113 = scmp.ne.s32.totalorder %s108, %s110
      %p114 = scmp.eq.s32.totalorder %s27, 0
      %p115 = por %p113, %p114
      %p116 = scmp.ne.s32.totalorder %s108, %s110
      %p117 = scmp.eq.s32.totalorder %s32, 1
      %p118 = por %p116, %p117
      %p119 = scmp.ne.s32.totalorder %s110, %s111
      %p120 = scmp.eq.s32.totalorder %s32, 0
      %p121 = por %p119, %p120
      %p122 = scmp.ne.s32.totalorder %s110, %s111
      %p123 = scmp.eq.s32.totalorder %s33, 1
      %p124 = por %p122, %p123
      %p126 = scmp.ne.s32.totalorder %s111, %s125
      %p127 = scmp.eq.s32.totalorder %s33, 0
      %p128 = por %p126, %p127
      %s130 = sadd.s32 %s129, 1
      %p133 = scmp.eq.s32.totalorder %s27, 1
      %p134 = scmp.ne.s32.totalorder %s129, %s131
      %p135 = scmp.eq.s32.totalorder %s27, 0
      %p136 = por %p134, %p135
      %p137 = scmp.ne.s32.totalorder %s129, %s131
      %p138 = scmp.eq.s32.totalorder %s32, 1
      %p139 = por %p137, %p138
      %p140 = scmp.ne.s32.totalorder %s131, %s132
      %p141 = scmp.eq.s32.totalorder %s32, 0
      %p142 = por %p140, %p141
      %p143 = scmp.ne.s32.totalorder %s131, %s132
      %p144 = scmp.eq.s32.totalorder %s33, 1
      %p145 = por %p143, %p144
      %p147 = scmp.ne.s32.totalorder %s132, %s146
      %p148 = scmp.eq.s32.totalorder %s33, 0
      %p149 = por %p147, %p148
      %s151 = sadd.s32 %s150, 1
      %p154 = scmp.eq.s32.totalorder %s27, 1
      %p155 = scmp.ne.s32.totalorder %s150, %s152
      %p156 = scmp.eq.s32.totalorder %s27, 0
      %p157 = por %p155, %p156
      %p158 = scmp.ne.s32.totalorder %s150, %s152
      %p159 = scmp.eq.s32.totalorder %s32, 1
      %p160 = por %p158, %p159
      %p161 = scmp.ne.s32.totalorder %s152, %s153
      %p162 = scmp.eq.s32.totalorder %s32, 0
      %p163 = por %p161, %p162
      %p164 = scmp.ne.s32.totalorder %s152, %s153
      %p165 = scmp.eq.s32.totalorder %s33, 1
      %p166 = por %p164, %p165
      %p168 = scmp.ne.s32.totalorder %s153, %s167
      %p169 = scmp.eq.s32.totalorder %s33, 0
      %p170 = por %p168, %p169
      %s171 = ssub.s32 %s27, %s34
      %p172 = scmp.eq.s32.totalorder %s171, 0
      %s174 = sadd.s32 %s173, 1
      %s175 = scalar_select %p172, %s173, %s174
      %p178 = pneg %p172
      %p179 = scmp.eq.s32.totalorder %s27, 1
      %p180 = por %p178, %p179
      %p181 = scmp.ne.s32.totalorder %s173, %s176
      %p182 = scmp.eq.s32.totalorder %s27, 0
      %p183 = por %p181, %p182
      %p184 = scmp.ne.s32.totalorder %s173, %s176
      %p185 = scmp.eq.s32.totalorder %s32, 1
      %p186 = por %p184, %p185
      %p187 = scmp.ne.s32.totalorder %s176, %s177
      %p188 = scmp.eq.s32.totalorder %s32, 0
      %p189 = por %p187, %p188
      %p190 = scmp.ne.s32.totalorder %s176, %s177
      %p191 = scmp.eq.s32.totalorder %s33, 1
      %p192 = por %p190, %p191
      %p194 = scmp.ne.s32.totalorder %s177, %s193
      %p195 = scmp.eq.s32.totalorder %s33, 0
      %p196 = por %p194, %p195
      %s197 = ssub.s32 %s27, %s34
      %p198 = scmp.eq.s32.totalorder %s197, 0
      %s200 = sadd.s32 %s199, 1
      %s201 = scalar_select %p198, %s199, %s200
      %p204 = pneg %p198
      %p205 = scmp.eq.s32.totalorder %s27, 1
      %p206 = por %p204, %p205
      %p207 = scmp.ne.s32.totalorder %s199, %s202
      %p208 = scmp.eq.s32.totalorder %s27, 0
      %p209 = por %p207, %p208
      %p210 = scmp.ne.s32.totalorder %s199, %s202
      %p211 = scmp.eq.s32.totalorder %s32, 1
      %p212 = por %p210, %p211
      %p213 = scmp.ne.s32.totalorder %s202, %s203
      %p214 = scmp.eq.s32.totalorder %s32, 0
      %p215 = por %p213, %p214
      %p216 = scmp.ne.s32.totalorder %s202, %s203
      %p217 = scmp.eq.s32.totalorder %s33, 1
      %p218 = por %p216, %p217
      %p220 = scmp.ne.s32.totalorder %s203, %s219
      %p221 = scmp.eq.s32.totalorder %s33, 0
      %p222 = por %p220, %p221
      %p223 = scmp.le.s32.totalorder 1, %s27
      %p224 = scmp.lt.s32.totalorder %s27, 3
      %p225 = pnand %p223, %p224
      %p226 = pneg %p225
      // Predicated region
      $region9: #{tpu_custom_call.1} parent=5 // pred_check
        _
      $region10: #{tpu_custom_call.1} parent=5 // pred_check_branch
        %228 = sbr.rel (%p225) target = $region12
      $region11: #{tpu_custom_call.1} parent=5 // pred_region
        %s229 = ssub.s32 %s27, 1
        // Predicated region
        $region13: #{tpu_custom_call.1} parent=11 // pred_check
          %p230 = pneg %p100
        $region14: #{tpu_custom_call.1} parent=11 // pred_check_branch
          %232 = sbr.rel (%p230) target = $region16
        $region15: #{tpu_custom_call.1} parent=11 // pred_region
          %s234 = ssub.s32 512, 512
          %235 = vsyncadd [#allocation6], %s234
          %s236 = sshll.u32 [#allocation7], 4
          %s237 = int_to_ptr.vmem [resolvable:$true] %s236
          %242 = dma.hbm_to_vmem [thread:$0]  %s2, 512, %s237, [#allocation6], 128, 128, 8
        $region16: #{tpu_custom_call.1} parent=11 // pred_fallthru
          _
        // Predicated region
        $region17: #{tpu_custom_call.1} parent=11 // pred_check
          %p243 = pneg %p121
        $region18: #{tpu_custom_call.1} parent=11 // pred_check_branch
          %245 = sbr.rel (%p243) target = $region20
        $region19: #{tpu_custom_call.1} parent=11 // pred_region
          %s247 = ssub.s32 384, 384
          %248 = vsyncadd [#allocation9], %s247
          %s249 = sshll.u32 [#allocation8], 4
          %s250 = int_to_ptr.vmem [resolvable:$true] %s249
          %255 = dma.hbm_to_vmem [thread:$0]  %s3, 384, %s250, [#allocation9], 128, 128, 8
        $region20: #{tpu_custom_call.1} parent=11 // pred_fallthru
          _
        // Predicated region
        $region21: #{tpu_custom_call.1} parent=11 // pred_check
          %p256 = pneg %p142
        $region22: #{tpu_custom_call.1} parent=11 // pred_check_branch
          %258 = sbr.rel (%p256) target = $region24
        $region23: #{tpu_custom_call.1} parent=11 // pred_region
          _
        $region24: #{tpu_custom_call.1} parent=11 // pred_fallthru
          _
        // Predicated region
        $region25: #{tpu_custom_call.1} parent=11 // pred_check
          %p259 = pneg %p163
        $region26: #{tpu_custom_call.1} parent=11 // pred_check_branch
          %261 = sbr.rel (%p259) target = $region28
        $region27: #{tpu_custom_call.1} parent=11 // pred_region
          _
        $region28: #{tpu_custom_call.1} parent=11 // pred_fallthru
          _
      $region12: #{tpu_custom_call.1} parent=5 // pred_fallthru
        _
      %p262 = scmp.lt.s32.totalorder %s27, 2
      // Predicated region
      $region29: #{tpu_custom_call.1} parent=5 // pred_check
        %p263 = pneg %p262
      $region30: #{tpu_custom_call.1} parent=5 // pred_check_branch
        %265 = sbr.rel (%p263) target = $region32
      $region31: #{tpu_custom_call.1} parent=5 // pred_region
        // Predicated region
        $region33: #{tpu_custom_call.1} parent=31 // pred_check
          %p266 = pneg %p47
        $region34: #{tpu_custom_call.1} parent=31 // pred_check_branch
          %268 = sbr.rel (%p266) target = $region36
        $region35: #{tpu_custom_call.1} parent=31 // pred_region
          %s269 = sand.u32 %s37, 1
          %s270 = scalar_lea.sflag [#allocation3], %s269
          %s271 = sand.u32 %s37, 1
          %s272 = smul.addr %s271, 128
          %s273 = scalar_lea.vmem [#allocation2], %s272
          %s274 = smul.u32 8, %s27
          %s276 = ssub.s32 2048, 2048
          %277 = vsyncadd %s270, %s276
          %s278 = smul.addr %s274, 2
          %s279 = smul.addr %s278, 128
          %s280 = scalar_lea.hbm %s0, %s279
          %s281 = sshll.u32 %s273, 4
          %s282 = int_to_ptr.vmem [resolvable:$true] %s281
          %287 = dma.hbm_to_vmem [thread:$0]  %s280, 2048, %s282, %s270, 128, 128, 8
        $region36: #{tpu_custom_call.1} parent=31 // pred_fallthru
          _
        // Predicated region
        $region37: #{tpu_custom_call.1} parent=31 // pred_check
          %p288 = pneg %p73
        $region38: #{tpu_custom_call.1} parent=31 // pred_check_branch
          %290 = sbr.rel (%p288) target = $region40
        $region39: #{tpu_custom_call.1} parent=31 // pred_region
          %s291 = sand.u32 %s27, 1
          %s292 = scalar_lea.sflag [#allocation6], %s291
          %s293 = sand.u32 %s63, 1
          %s294 = smul.addr %s293, 8
          %s295 = scalar_lea.vmem [#allocation5], %s294
          %s297 = ssub.s32 128, 128
          %298 = vsyncadd %s292, %s297
          %s299 = smul.addr %s27, 128
          %s300 = scalar_lea.hbm %s1, %s299
          %s302 = sshll.u32 %s295, 4
          %s303 = int_to_ptr.vmem [resolvable:$true] %s302
          %305 = dma.hbm_to_vmem [thread:$0]  %s300, 128, %s303, %s292
        $region40: #{tpu_custom_call.1} parent=31 // pred_fallthru
          _
      $region32: #{tpu_custom_call.1} parent=5 // pred_fallthru
        _
      %p306 = scmp.le.s32.totalorder 1, %s27
      %p307 = scmp.lt.s32.totalorder %s27, 3
      %p308 = pnand %p306, %p307
      %p309 = pneg %p308
      // Predicated region
      $region41: #{tpu_custom_call.1} parent=5 // pred_check
        _
      $region42: #{tpu_custom_call.1} parent=5 // pred_check_branch
        %311 = sbr.rel (%p308) target = $region44
      $region43: #{tpu_custom_call.1} parent=5 // pred_region
        %s312 = ssub.s32 %s27, 1
        %s313 = sand.u32 %s40, 1
        %s314 = scalar_lea.sflag [#allocation3], %s313
        %s315 = sand.u32 %s40, 1
        %s316 = smul.addr %s315, 128
        %s317 = scalar_lea.vmem [#allocation2], %s316
        // Predicated region
        $region45: #{tpu_custom_call.1} parent=43 // pred_check
          %p318 = pneg %p53
        $region46: #{tpu_custom_call.1} parent=43 // pred_check_branch
          %320 = sbr.rel (%p318) target = $region48
        $region47: #{tpu_custom_call.1} parent=43 // pred_region
          %321 = dma.done %s314, 2048
        $region48: #{tpu_custom_call.1} parent=43 // pred_fallthru
          _
        %s322 = sand.u32 %s32, 1
        %s323 = scalar_lea.sflag [#allocation6], %s322
        %s324 = sand.u32 %s66, 1
        %s325 = smul.addr %s324, 8
        %s326 = scalar_lea.vmem [#allocation5], %s325
        // Predicated region
        $region49: #{tpu_custom_call.1} parent=43 // pred_check
          %p327 = pneg %p79
        $region50: #{tpu_custom_call.1} parent=43 // pred_check_branch
          %329 = sbr.rel (%p327) target = $region52
        $region51: #{tpu_custom_call.1} parent=43 // pred_region
          %330 = dma.done %s323, 128
        $region52: #{tpu_custom_call.1} parent=43 // pred_fallthru
          _
        // Predicated region
        $region53: #{tpu_custom_call.1} parent=43 // pred_check
          %p331 = pneg %p100
        $region54: #{tpu_custom_call.1} parent=43 // pred_check_branch
          %333 = sbr.rel (%p331) target = $region56
        $region55: #{tpu_custom_call.1} parent=43 // pred_region
          %334 = dma.done [#allocation6], 512
        $region56: #{tpu_custom_call.1} parent=43 // pred_fallthru
          _
        // Predicated region
        $region57: #{tpu_custom_call.1} parent=43 // pred_check
          %p335 = pneg %p121
        $region58: #{tpu_custom_call.1} parent=43 // pred_check_branch
          %337 = sbr.rel (%p335) target = $region60
        $region59: #{tpu_custom_call.1} parent=43 // pred_region
          %338 = dma.done [#allocation9], 384
        $region60: #{tpu_custom_call.1} parent=43 // pred_fallthru
          _
        %s339 = sand.u32 %s40, 1
        %s340 = scalar_lea.sflag [#allocation3], %s339
        %s341 = sand.u32 %s40, 1
        %s342 = smul.addr %s341, 128
        %s343 = scalar_lea.vmem [#allocation2], %s342
        %p344 = pneg %p53
        %p345 = pneg %p50
        %s346 = sand.u32 %s32, 1
        %s347 = scalar_lea.sflag [#allocation6], %s346
        %s348 = sand.u32 %s66, 1
        %s349 = smul.addr %s348, 8
        %s350 = scalar_lea.vmem [#allocation5], %s349
        %p351 = pneg %p79
        %p352 = pneg %p76
        %p353 = pneg %p100
        %p354 = pneg %p97
        %p355 = pneg %p121
        %p356 = pneg %p118
        %p357 = pneg %p142
        %p358 = pneg %p139
        %p359 = pneg %p163
        %p360 = pneg %p160
        %p361 = pneg %p189
        %p362 = pneg %p186
        %s363 = sand.u32 %s176, 1
        %s364 = scalar_lea.sflag [#allocation4], %s363
        %s365 = sand.u32 %s176, 1
        %s366 = smul.addr %s365, 8
        %s367 = scalar_lea.vmem [#allocation10], %s366
        %p368 = pneg %p215
        %p369 = pneg %p212
        %s370 = sand.u32 %s202, 1
        %s371 = scalar_lea.sflag [#allocation12], %s370
        %s372 = sand.u32 %s202, 1
        %s373 = smul.addr %s372, 8
        %s374 = scalar_lea.vmem [#allocation11], %s373
        %s375 = smul.u32 8, %s32
        %v376 = vld [vmem:[%s317] sm:$0xff]
        %v377 = vld [vmem:[%s317 + $0x8] sm:$0xff]
        %v378 = vld [vmem:[%s317 + $0x10] sm:$0xff]
        %v379 = vld [vmem:[%s317 + $0x18] sm:$0xff]
        %v380 = vld [vmem:[%s317 + $0x20] sm:$0xff]
        %v381 = vld [vmem:[%s317 + $0x28] sm:$0xff]
        %v382 = vld [vmem:[%s317 + $0x30] sm:$0xff]
        %v383 = vld [vmem:[%s317 + $0x38] sm:$0xff]
        %v384 = vld [vmem:[%s317 + $0x40] sm:$0xff]
        %v385 = vld [vmem:[%s317 + $0x48] sm:$0xff]
        %v386 = vld [vmem:[%s317 + $0x50] sm:$0xff]
        %v387 = vld [vmem:[%s317 + $0x58] sm:$0xff]
        %v388 = vld [vmem:[%s317 + $0x60] sm:$0xff]
        %v389 = vld [vmem:[%s317 + $0x68] sm:$0xff]
        %v390 = vld [vmem:[%s317 + $0x70] sm:$0xff]
        %v391 = vld [vmem:[%s317 + $0x78] sm:$0xff]
        %v392 = vld [vmem:[#allocation7] sm:$0xff]
        %v393 = vld [vmem:[#allocation7 + $0x8] sm:$0xff]
        %v394 = vld [vmem:[#allocation7 + $0x10] sm:$0xff]
        %v395 = vld [vmem:[#allocation7 + $0x18] sm:$0xff]
        %vm396 = vcmask 261120
        %v398 = vsel %vm396, %v376, 0
        %v401 = vsel %vm396, %v377, 0
        %v404 = vsel %vm396, %v378, 0
        %v407 = vsel %vm396, %v379, 0
        %v410 = vsel %vm396, %v380, 0
        %v413 = vsel %vm396, %v381, 0
        %v416 = vsel %vm396, %v382, 0
        %v419 = vsel %vm396, %v383, 0
        %v422 = vsel %vm396, %v384, 0
        %v425 = vsel %vm396, %v385, 0
        %v428 = vsel %vm396, %v386, 0
        %v431 = vsel %vm396, %v387, 0
        %v434 = vsel %vm396, %v388, 0
        %v437 = vsel %vm396, %v389, 0
        %v440 = vsel %vm396, %v390, 0
        %v443 = vsel %vm396, %v391, 0
        %445 = vmatprep.subr.mxu0 0.0
        %446 = vmatpush1.msra.mxu0 0.0
        %447 = vmatprep.subr.mxu0 0.0
        %448 = vmatpush1.msra.mxu0 0.0
        %449 = vmatprep.subr.mxu0 0.0
        %450 = vmatpush1.msra.mxu0 0.0
        %451 = vmatprep.subr.mxu0 0.0
        %452 = vmatpush1.msra.mxu0 0.0
        %453 = vmatprep.subr.mxu0 0.0
        %454 = vmatpush1.msra.mxu0 0.0
        %455 = vmatprep.subr.mxu0 0.0
        %456 = vmatpush1.msra.mxu0 0.0
        %457 = vmatprep.subr.mxu0 0.0
        %458 = vmatpush1.msra.mxu0 0.0
        %459 = vmatprep.subr.mxu0 0.0
        %460 = vmatpush1.msra.mxu0 0.0
        %461 = vmatprep.subr.mxu0 0.0
        %462 = vmatpush1.msra.mxu0 0.0
        %463 = vmatprep.subr.mxu0 0.0
        %464 = vmatpush1.msra.mxu0 0.0
        %465 = vmatprep.subr.mxu0 0.0
        %466 = vmatpush1.msra.mxu0 0.0
        %467 = vmatprep.subr.mxu0 0.0
        %468 = vmatpush1.msra.mxu0 0.0
        %469 = vmatprep.subr.mxu0 0.0
        %470 = vmatpush1.msra.mxu0 %v395
        %471 = vmatprep.subr.mxu0 0.0
        %472 = vmatpush1.msra.mxu0 %v394
        %473 = vmatprep.subr.mxu0 0.0
        %474 = vmatpush1.msra.mxu0 %v393
        %475 = vmatprep.subr.mxu0 0.0
        %476 = vmatpush1.msra.mxu0 %v392
        %477 = vmatprep.subr.mxu0 0.0
        %478 = vmatpush2.msra.mxu0 0.0
        %479 = vmatprep.subr.mxu0 0.0
        %480 = vmatpush2.msra.mxu0 0.0
        %481 = vmatprep.subr.mxu0 0.0
        %482 = vmatpush2.msra.mxu0 0.0
        %483 = vmatprep.subr.mxu0 0.0
        %484 = vmatpush2.msra.mxu0 0.0
        %485 = vmatprep.subr.mxu0 0.0
        %486 = vmatpush2.msra.mxu0 0.0
        %487 = vmatprep.subr.mxu0 0.0
        %488 = vmatpush2.msra.mxu0 0.0
        %489 = vmatprep.subr.mxu0 0.0
        %490 = vmatpush2.msra.mxu0 0.0
        %491 = vmatprep.subr.mxu0 0.0
        %492 = vmatpush2.msra.mxu0 0.0
        %493 = vmatprep.subr.mxu0 0.0
        %494 = vmatpush2.msra.mxu0 0.0
        %495 = vmatprep.subr.mxu0 0.0
        %496 = vmatpush2.msra.mxu0 0.0
        %497 = vmatprep.subr.mxu0 0.0
        %498 = vmatpush2.msra.mxu0 0.0
        %499 = vmatprep.subr.mxu0 0.0
        %500 = vmatpush2.msra.mxu0 0.0
        %501 = vmatprep.subr.mxu0 0.0
        %502 = vmatpush2.msra.mxu0 0.0
        %503 = vmatprep.subr.mxu0 0.0
        %504 = vmatpush2.msra.mxu0 0.0
        %505 = vmatprep.subr.mxu0 0.0
        %506 = vmatpush2.msra.mxu0 0.0
        %507 = vmatprep.subr.mxu0 0.0
        %508 = vmatpush2.msra.mxu0 0.0
        %509 = vmatprep.mubr.f32.mxu0 0.0
        %510 = vmatmul.mubr.f32.gmra.mxu0 %v398
        %v511 = vpop.f32.mrf.mxu0
        %v512 = vadd.f32 0.0, %v511
        %v513 = vpop.f32.mrf.mxu0
        %514 = vmatprep.mubr.f32.mxu0 0.0
        %515 = vmatmul.mubr.f32.gmra.mxu0 %v401
        %v516 = vpop.f32.mrf.mxu0
        %v517 = vadd.f32 0.0, %v516
        %v518 = vpop.f32.mrf.mxu0
        %519 = vmatprep.mubr.f32.mxu0 0.0
        %520 = vmatmul.mubr.f32.gmra.mxu0 %v404
        %v521 = vpop.f32.mrf.mxu0
        %v522 = vadd.f32 0.0, %v521
        %v523 = vpop.f32.mrf.mxu0
        %524 = vmatprep.mubr.f32.mxu0 0.0
        %525 = vmatmul.mubr.f32.gmra.mxu0 %v407
        %v526 = vpop.f32.mrf.mxu0
        %v527 = vadd.f32 0.0, %v526
        %v528 = vpop.f32.mrf.mxu0
        %529 = vmatprep.mubr.f32.mxu0 0.0
        %530 = vmatmul.mubr.f32.gmra.mxu0 %v410
        %v531 = vpop.f32.mrf.mxu0
        %v532 = vadd.f32 0.0, %v531
        %v533 = vpop.f32.mrf.mxu0
        %534 = vmatprep.mubr.f32.mxu0 0.0
        %535 = vmatmul.mubr.f32.gmra.mxu0 %v413
        %v536 = vpop.f32.mrf.mxu0
        %v537 = vadd.f32 0.0, %v536
        %v538 = vpop.f32.mrf.mxu0
        %539 = vmatprep.mubr.f32.mxu0 0.0
        %540 = vmatmul.mubr.f32.gmra.mxu0 %v416
        %v541 = vpop.f32.mrf.mxu0
        %v542 = vadd.f32 0.0, %v541
        %v543 = vpop.f32.mrf.mxu0
        %544 = vmatprep.mubr.f32.mxu0 0.0
        %545 = vmatmul.mubr.f32.gmra.mxu0 %v419
        %v546 = vpop.f32.mrf.mxu0
        %v547 = vadd.f32 0.0, %v546
        %v548 = vpop.f32.mrf.mxu0
        %549 = vmatprep.mubr.f32.mxu0 0.0
        %550 = vmatmul.mubr.f32.gmra.mxu0 %v422
        %v551 = vpop.f32.mrf.mxu0
        %v552 = vadd.f32 0.0, %v551
        %v553 = vpop.f32.mrf.mxu0
        %554 = vmatprep.mubr.f32.mxu0 0.0
        %555 = vmatmul.mubr.f32.gmra.mxu0 %v425
        %v556 = vpop.f32.mrf.mxu0
        %v557 = vadd.f32 0.0, %v556
        %v558 = vpop.f32.mrf.mxu0
        %559 = vmatprep.mubr.f32.mxu0 0.0
        %560 = vmatmul.mubr.f32.gmra.mxu0 %v428
        %v561 = vpop.f32.mrf.mxu0
        %v562 = vadd.f32 0.0, %v561
        %v563 = vpop.f32.mrf.mxu0
        %564 = vmatprep.mubr.f32.mxu0 0.0
        %565 = vmatmul.mubr.f32.gmra.mxu0 %v431
        %v566 = vpop.f32.mrf.mxu0
        %v567 = vadd.f32 0.0, %v566
        %v568 = vpop.f32.mrf.mxu0
        %569 = vmatprep.mubr.f32.mxu0 0.0
        %570 = vmatmul.mubr.f32.gmra.mxu0 %v434
        %v571 = vpop.f32.mrf.mxu0
        %v572 = vadd.f32 0.0, %v571
        %v573 = vpop.f32.mrf.mxu0
        %574 = vmatprep.mubr.f32.mxu0 0.0
        %575 = vmatmul.mubr.f32.gmra.mxu0 %v437
        %v576 = vpop.f32.mrf.mxu0
        %v577 = vadd.f32 0.0, %v576
        %v578 = vpop.f32.mrf.mxu0
        %579 = vmatprep.mubr.f32.mxu0 0.0
        %580 = vmatmul.mubr.f32.gmra.mxu0 %v440
        %v581 = vpop.f32.mrf.mxu0
        %v582 = vadd.f32 0.0, %v581
        %v583 = vpop.f32.mrf.mxu0
        %584 = vmatprep.mubr.f32.mxu0 0.0
        %585 = vmatmul.mubr.f32.gmra.mxu0 %v443
        %v586 = vpop.f32.mrf.mxu0
        %v587 = vadd.f32 0.0, %v586
        %v588 = vpop.f32.mrf.mxu0
        %589 = vdwg.mxu0
        %v590 = vld [vmem:[%s326] sm:$0xff]
        %v591 = vld [vmem:[#allocation8] sm:$0xff]
        %v592 = vld [vmem:[#allocation8 + $0x8] sm:$0xff]
        %v593 = vld [vmem:[#allocation8 + $0x10] sm:$0xff]
        %v594 = vld [vmem:[%s4] sm:$0x1]
        %v596 = vlaneseq
        %v597 = vshrl.u32 %v596, 7
        %v598 = vsub.s32 0, %v597
        %v599 = vrot.slane %v594, %v598
        %vm601 = vcmask 195584
        %v603 = vsel %vm601, %v590, 0
        %605 = vmatprep.subr.mxu0 0.0
        %606 = vmatpush1.msra.mxu0 0.0
        %607 = vmatprep.subr.mxu0 0.0
        %608 = vmatpush1.msra.mxu0 0.0
        %609 = vmatprep.subr.mxu0 0.0
        %610 = vmatpush1.msra.mxu0 0.0
        %611 = vmatprep.subr.mxu0 0.0
        %612 = vmatpush1.msra.mxu0 0.0
        %613 = vmatprep.subr.mxu0 0.0
        %614 = vmatpush1.msra.mxu0 0.0
        %615 = vmatprep.subr.mxu0 0.0
        %616 = vmatpush1.msra.mxu0 0.0
        %617 = vmatprep.subr.mxu0 0.0
        %618 = vmatpush1.msra.mxu0 0.0
        %619 = vmatprep.subr.mxu0 0.0
        %620 = vmatpush1.msra.mxu0 0.0
        %621 = vmatprep.subr.mxu0 0.0
        %622 = vmatpush1.msra.mxu0 0.0
        %623 = vmatprep.subr.mxu0 0.0
        %624 = vmatpush1.msra.mxu0 0.0
        %625 = vmatprep.subr.mxu0 0.0
        %626 = vmatpush1.msra.mxu0 0.0
        %627 = vmatprep.subr.mxu0 0.0
        %628 = vmatpush1.msra.mxu0 0.0
        %629 = vmatprep.subr.mxu0 0.0
        %630 = vmatpush1.msra.mxu0 0.0
        %631 = vmatprep.subr.mxu0 0.0
        %632 = vmatpush1.msra.mxu0 %v593
        %633 = vmatprep.subr.mxu0 0.0
        %634 = vmatpush1.msra.mxu0 %v592
        %635 = vmatprep.subr.mxu0 0.0
        %636 = vmatpush1.msra.mxu0 %v591
        %637 = vmatprep.subr.mxu0 0.0
        %638 = vmatpush2.msra.mxu0 0.0
        %639 = vmatprep.subr.mxu0 0.0
        %640 = vmatpush2.msra.mxu0 0.0
        %641 = vmatprep.subr.mxu0 0.0
        %642 = vmatpush2.msra.mxu0 0.0
        %643 = vmatprep.subr.mxu0 0.0
        %644 = vmatpush2.msra.mxu0 0.0
        %645 = vmatprep.subr.mxu0 0.0
        %646 = vmatpush2.msra.mxu0 0.0
        %647 = vmatprep.subr.mxu0 0.0
        %648 = vmatpush2.msra.mxu0 0.0
        %649 = vmatprep.subr.mxu0 0.0
        %650 = vmatpush2.msra.mxu0 0.0
        %651 = vmatprep.subr.mxu0 0.0
        %652 = vmatpush2.msra.mxu0 0.0
        %653 = vmatprep.subr.mxu0 0.0
        %654 = vmatpush2.msra.mxu0 0.0
        %655 = vmatprep.subr.mxu0 0.0
        %656 = vmatpush2.msra.mxu0 0.0
        %657 = vmatprep.subr.mxu0 0.0
        %658 = vmatpush2.msra.mxu0 0.0
        %659 = vmatprep.subr.mxu0 0.0
        %660 = vmatpush2.msra.mxu0 0.0
        %661 = vmatprep.subr.mxu0 0.0
        %662 = vmatpush2.msra.mxu0 0.0
        %663 = vmatprep.subr.mxu0 0.0
        %664 = vmatpush2.msra.mxu0 0.0
        %665 = vmatprep.subr.mxu0 0.0
        %666 = vmatpush2.msra.mxu0 0.0
        %667 = vmatprep.subr.mxu0 0.0
        %668 = vmatpush2.msra.mxu0 0.0
        %669 = vmatprep.mubr.f32.mxu0 0.0
        %670 = vmatmul.mubr.f32.gmra.mxu0 %v603
        %v671 = vpop.f32.mrf.mxu0
        %v672 = vadd.f32 %v599, %v671
        %v673 = vpop.f32.mrf.mxu0
        %674 = vdwg.mxu0
        %v676 = vcombine.high %v672, %v672
        %v678 = vunpack.c.l.s4 1966171168
        %v679 = vunpack.c.0.s8 %v678
        %v680 = vlaneseq
        %v681 = vshrl.u32 %v680, 7
        %v682 = vsub.s32 %v679, %v681
        %v683 = vrot.slane %v672, %v682
        %v685 = vunpack.c.l.s4 1966171168
        %v686 = vunpack.c.0.s8 %v685
        %v687 = vlaneseq
        %v688 = vshrl.u32 %v687, 7
        %v689 = vsub.s32 %v686, %v688
        %v690 = vrot.slane %v676, %v689
        %v691 = vcombine.high %v683, %v683
        %v692 = vcombine.high %v690, %v690
        %v694 = vunpack.c.l.s4 1966171168
        %v695 = vunpack.c.0.s8 %v694
        %v696 = vlaneseq
        %v697 = vshrl.u32 %v696, 7
        %v698 = vsub.s32 %v695, %v697
        %v699 = vrot.slane %v683, %v698
        %v701 = vunpack.c.l.s4 1966171168
        %v702 = vunpack.c.0.s8 %v701
        %v703 = vlaneseq
        %v704 = vshrl.u32 %v703, 7
        %v705 = vsub.s32 %v702, %v704
        %v706 = vrot.slane %v690, %v705
        %v708 = vunpack.c.l.s4 1966171168
        %v709 = vunpack.c.0.s8 %v708
        %v710 = vlaneseq
        %v711 = vshrl.u32 %v710, 7
        %v712 = vsub.s32 %v709, %v711
        %v713 = vrot.slane %v691, %v712
        %v715 = vunpack.c.l.s4 1966171168
        %v716 = vunpack.c.0.s8 %v715
        %v717 = vlaneseq
        %v718 = vshrl.u32 %v717, 7
        %v719 = vsub.s32 %v716, %v718
        %v720 = vrot.slane %v692, %v719
        %v721 = vcombine.high %v699, %v699
        %v722 = vcombine.high %v706, %v706
        %v723 = vcombine.high %v713, %v713
        %v724 = vcombine.high %v720, %v720
        %v725 = vlaneseq
        %v726 = vshrl.u32 %v725, 7
        %v727 = vsub.s32 0, %v726
        %v728 = vrot.slane %v699, %v727
        %v729 = vlaneseq
        %v730 = vshrl.u32 %v729, 7
        %v731 = vsub.s32 0, %v730
        %v732 = vrot.slane %v713, %v731
        %v733 = vlaneseq
        %v734 = vshrl.u32 %v733, 7
        %v735 = vsub.s32 0, %v734
        %v736 = vrot.slane %v721, %v735
        %v737 = vlaneseq
        %v738 = vshrl.u32 %v737, 7
        %v739 = vsub.s32 0, %v738
        %v740 = vrot.slane %v723, %v739
        %v741 = vlaneseq
        %v742 = vshrl.u32 %v741, 7
        %v743 = vsub.s32 0, %v742
        %v744 = vrot.slane %v706, %v743
        %v745 = vlaneseq
        %v746 = vshrl.u32 %v745, 7
        %v747 = vsub.s32 0, %v746
        %v748 = vrot.slane %v720, %v747
        %v749 = vlaneseq
        %v750 = vshrl.u32 %v749, 7
        %v751 = vsub.s32 0, %v750
        %v752 = vrot.slane %v722, %v751
        %v753 = vlaneseq
        %v754 = vshrl.u32 %v753, 7
        %v755 = vsub.s32 0, %v754
        %v756 = vrot.slane %v724, %v755
        %v765 = vadd.f32 %v512, %v728
        %v766 = vadd.f32 %v517, %v728
        %v767 = vadd.f32 %v522, %v732
        %v768 = vadd.f32 %v527, %v732
        %v769 = vadd.f32 %v532, %v736
        %v770 = vadd.f32 %v537, %v736
        %v771 = vadd.f32 %v542, %v740
        %v772 = vadd.f32 %v547, %v740
        %v773 = vadd.f32 %v552, %v744
        %v774 = vadd.f32 %v557, %v744
        %v775 = vadd.f32 %v562, %v748
        %v776 = vadd.f32 %v567, %v748
        %v777 = vadd.f32 %v572, %v752
        %v778 = vadd.f32 %v577, %v752
        %v779 = vadd.f32 %v582, %v756
        %v780 = vadd.f32 %v587, %v756
        %v781 = vmax.f32 %v765, 0.0
        %v782 = vmax.f32 %v766, 0.0
        %v783 = vmax.f32 %v767, 0.0
        %v784 = vmax.f32 %v768, 0.0
        %v785 = vmax.f32 %v769, 0.0
        %v786 = vmax.f32 %v770, 0.0
        %v787 = vmax.f32 %v771, 0.0
        %v788 = vmax.f32 %v772, 0.0
        %v789 = vmax.f32 %v773, 0.0
        %v790 = vmax.f32 %v774, 0.0
        %v791 = vmax.f32 %v775, 0.0
        %v792 = vmax.f32 %v776, 0.0
        %v793 = vmax.f32 %v777, 0.0
        %v794 = vmax.f32 %v778, 0.0
        %v795 = vmax.f32 %v779, 0.0
        %v796 = vmax.f32 %v780, 0.0
        %v797 = vld [vmem:[%s5] sm:$0x1]
        %v799 = vlaneseq
        %v800 = vshrl.u32 %v799, 7
        %v801 = vsub.s32 0, %v800
        %v802 = vrot.slane %v797, %v801
        %v804 = vmul.f32 %v781, %v802
        %v805 = vmul.f32 %v782, %v802
        %v806 = vmul.f32 %v783, %v802
        %v807 = vmul.f32 %v784, %v802
        %v808 = vmul.f32 %v785, %v802
        %v809 = vmul.f32 %v786, %v802
        %v810 = vmul.f32 %v787, %v802
        %v811 = vmul.f32 %v788, %v802
        %v812 = vmul.f32 %v789, %v802
        %v813 = vmul.f32 %v790, %v802
        %v814 = vmul.f32 %v791, %v802
        %v815 = vmul.f32 %v792, %v802
        %v816 = vmul.f32 %v793, %v802
        %v817 = vmul.f32 %v794, %v802
        %v818 = vmul.f32 %v795, %v802
        %v819 = vmul.f32 %v796, %v802
        %vm820 = vcmask 326656
        %v821 = vsel %vm820, %v804, 0.0
        %822 = vadd.xlane.f32.xlu0 %v821
        %v823 = vpop.xlane.xlu0 %822
        %v824 = vsel %vm820, %v805, 0.0
        %825 = vadd.xlane.f32.xlu0 %v824
        %v826 = vpop.xlane.xlu0 %825
        %v827 = vsel %vm820, %v806, 0.0
        %828 = vadd.xlane.f32.xlu0 %v827
        %v829 = vpop.xlane.xlu0 %828
        %v830 = vsel %vm820, %v807, 0.0
        %831 = vadd.xlane.f32.xlu0 %v830
        %v832 = vpop.xlane.xlu0 %831
        %v833 = vsel %vm820, %v808, 0.0
        %834 = vadd.xlane.f32.xlu0 %v833
        %v835 = vpop.xlane.xlu0 %834
        %v836 = vsel %vm820, %v809, 0.0
        %837 = vadd.xlane.f32.xlu0 %v836
        %v838 = vpop.xlane.xlu0 %837
        %v839 = vsel %vm820, %v810, 0.0
        %840 = vadd.xlane.f32.xlu0 %v839
        %v841 = vpop.xlane.xlu0 %840
        %v842 = vsel %vm820, %v811, 0.0
        %843 = vadd.xlane.f32.xlu0 %v842
        %v844 = vpop.xlane.xlu0 %843
        %v845 = vsel %vm820, %v812, 0.0
        %846 = vadd.xlane.f32.xlu0 %v845
        %v847 = vpop.xlane.xlu0 %846
        %v848 = vsel %vm820, %v813, 0.0
        %849 = vadd.xlane.f32.xlu0 %v848
        %v850 = vpop.xlane.xlu0 %849
        %v851 = vsel %vm820, %v814, 0.0
        %852 = vadd.xlane.f32.xlu0 %v851
        %v853 = vpop.xlane.xlu0 %852
        %v854 = vsel %vm820, %v815, 0.0
        %855 = vadd.xlane.f32.xlu0 %v854
        %v856 = vpop.xlane.xlu0 %855
        %v857 = vsel %vm820, %v816, 0.0
        %858 = vadd.xlane.f32.xlu0 %v857
        %v859 = vpop.xlane.xlu0 %858
        %v860 = vsel %vm820, %v817, 0.0
        %861 = vadd.xlane.f32.xlu0 %v860
        %v862 = vpop.xlane.xlu0 %861
        %v863 = vsel %vm820, %v818, 0.0
        %864 = vadd.xlane.f32.xlu0 %v863
        %v865 = vpop.xlane.xlu0 %864
        %v866 = vsel %vm820, %v819, 0.0
        %867 = vadd.xlane.f32.xlu0 %v866
        %v868 = vpop.xlane.xlu0 %867
        %v885 = vlaneseq
        %v886 = vand.u32 %v885, 127
        %v887 = vlaneseq
        %v888 = vshrl.u32 %v887, 7
        %v889 = vsub.s32 %v886, %v888
        %v890 = vrot.slane %v823, %v889
        %v891 = vadd.s32 %v886, 4294967288
        %v892 = vlaneseq
        %v893 = vshrl.u32 %v892, 7
        %v894 = vsub.s32 %v891, %v893
        %v895 = vrot.slane %v826, %v894
        %vm896 = vcmask 130112
        %v897 = vsel %vm896, %v895, %v890
        %v898 = vlaneseq
        %v899 = vshrl.u32 %v898, 7
        %v900 = vsub.s32 %v886, %v899
        %v901 = vrot.slane %v829, %v900
        %v902 = vlaneseq
        %v903 = vshrl.u32 %v902, 7
        %v904 = vsub.s32 %v891, %v903
        %v905 = vrot.slane %v832, %v904
        %v906 = vsel %vm896, %v905, %v901
        %v907 = vlaneseq
        %v908 = vshrl.u32 %v907, 7
        %v909 = vsub.s32 %v886, %v908
        %v910 = vrot.slane %v835, %v909
        %v911 = vlaneseq
        %v912 = vshrl.u32 %v911, 7
        %v913 = vsub.s32 %v891, %v912
        %v914 = vrot.slane %v838, %v913
        %v915 = vsel %vm896, %v914, %v910
        %v916 = vlaneseq
        %v917 = vshrl.u32 %v916, 7
        %v918 = vsub.s32 %v886, %v917
        %v919 = vrot.slane %v841, %v918
        %v920 = vlaneseq
        %v921 = vshrl.u32 %v920, 7
        %v922 = vsub.s32 %v891, %v921
        %v923 = vrot.slane %v844, %v922
        %v924 = vsel %vm896, %v923, %v919
        %v925 = vlaneseq
        %v926 = vshrl.u32 %v925, 7
        %v927 = vsub.s32 %v886, %v926
        %v928 = vrot.slane %v847, %v927
        %v929 = vlaneseq
        %v930 = vshrl.u32 %v929, 7
        %v931 = vsub.s32 %v891, %v930
        %v932 = vrot.slane %v850, %v931
        %v933 = vsel %vm896, %v932, %v928
        %v934 = vlaneseq
        %v935 = vshrl.u32 %v934, 7
        %v936 = vsub.s32 %v886, %v935
        %v937 = vrot.slane %v853, %v936
        %v938 = vlaneseq
        %v939 = vshrl.u32 %v938, 7
        %v940 = vsub.s32 %v891, %v939
        %v941 = vrot.slane %v856, %v940
        %v942 = vsel %vm896, %v941, %v937
        %v943 = vlaneseq
        %v944 = vshrl.u32 %v943, 7
        %v945 = vsub.s32 %v886, %v944
        %v946 = vrot.slane %v859, %v945
        %v947 = vlaneseq
        %v948 = vshrl.u32 %v947, 7
        %v949 = vsub.s32 %v891, %v948
        %v950 = vrot.slane %v862, %v949
        %v951 = vsel %vm896, %v950, %v946
        %v952 = vlaneseq
        %v953 = vshrl.u32 %v952, 7
        %v954 = vsub.s32 %v886, %v953
        %v955 = vrot.slane %v865, %v954
        %v956 = vlaneseq
        %v957 = vshrl.u32 %v956, 7
        %v958 = vsub.s32 %v891, %v957
        %v959 = vrot.slane %v868, %v958
        %v960 = vsel %vm896, %v959, %v955
        %vm961 = vcmask 1041409
        %v962 = vsel %vm961, %v906, %v897
        %vm963 = vcmask 1042434
        %v964 = vsel %vm963, %v915, %v962
        %vm965 = vcmask 1043459
        %v966 = vsel %vm965, %v924, %v964
        %vm967 = vcmask 1044484
        %v968 = vsel %vm967, %v933, %v966
        %vm969 = vcmask 1045509
        %v970 = vsel %vm969, %v942, %v968
        %vm971 = vcmask 1046534
        %v972 = vsel %vm971, %v951, %v970
        %vm973 = vcmask 1047559
        %v974 = vsel %vm973, %v960, %v972
        %vm976 = vcmask 130048
        %v977 = vsel %vm976, %v974, -inf
        %978 = vmax.xlane.f32.xlu0 %v977
        %v979 = vpop.xlane.xlu0 %978
        %v981 = vlaneseq
        %v982 = vshrl.u32 %v981, 7
        %v983 = vsub.s32 0, %v982
        %v984 = vrot.slane %v979, %v983
        %v985 = vlaneseq
        %v986 = vshrl.u32 %v985, 7
        %v987 = vsub.s32 1, %v986
        %v988 = vrot.slane %v979, %v987
        %v989 = vlaneseq
        %v990 = vshrl.u32 %v989, 7
        %v991 = vsub.s32 2, %v990
        %v992 = vrot.slane %v979, %v991
        %v993 = vlaneseq
        %v994 = vshrl.u32 %v993, 7
        %v995 = vsub.s32 3, %v994
        %v996 = vrot.slane %v979, %v995
        %v997 = vlaneseq
        %v998 = vshrl.u32 %v997, 7
        %v999 = vsub.s32 4, %v998
        %v1000 = vrot.slane %v979, %v999
        %v1001 = vlaneseq
        %v1002 = vshrl.u32 %v1001, 7
        %v1003 = vsub.s32 5, %v1002
        %v1004 = vrot.slane %v979, %v1003
        %v1005 = vlaneseq
        %v1006 = vshrl.u32 %v1005, 7
        %v1007 = vsub.s32 6, %v1006
        %v1008 = vrot.slane %v979, %v1007
        %v1009 = vlaneseq
        %v1010 = vshrl.u32 %v1009, 7
        %v1011 = vsub.s32 7, %v1010
        %v1012 = vrot.slane %v979, %v1011
        %v1021 = vsub.f32 %v823, %v984
        %v1022 = vsub.f32 %v826, %v984
        %v1023 = vsub.f32 %v829, %v988
        %v1024 = vsub.f32 %v832, %v988
        %v1025 = vsub.f32 %v835, %v992
        %v1026 = vsub.f32 %v838, %v992
        %v1027 = vsub.f32 %v841, %v996
        %v1028 = vsub.f32 %v844, %v996
        %v1029 = vsub.f32 %v847, %v1000
        %v1030 = vsub.f32 %v850, %v1000
        %v1031 = vsub.f32 %v853, %v1004
        %v1032 = vsub.f32 %v856, %v1004
        %v1033 = vsub.f32 %v859, %v1008
        %v1034 = vsub.f32 %v862, %v1008
        %v1035 = vsub.f32 %v865, %v1012
        %v1036 = vsub.f32 %v868, %v1012
        %v1037 = vmul.f32 %v1021, 1.442695
        %v1038 = vpow.pop %v1037
        %v1039 = vmul.f32 %v1022, 1.442695
        %v1040 = vpow.pop %v1039
        %v1041 = vmul.f32 %v1023, 1.442695
        %v1042 = vpow.pop %v1041
        %v1043 = vmul.f32 %v1024, 1.442695
        %v1044 = vpow.pop %v1043
        %v1045 = vmul.f32 %v1025, 1.442695
        %v1046 = vpow.pop %v1045
        %v1047 = vmul.f32 %v1026, 1.442695
        %v1048 = vpow.pop %v1047
        %v1049 = vmul.f32 %v1027, 1.442695
        %v1050 = vpow.pop %v1049
        %v1051 = vmul.f32 %v1028, 1.442695
        %v1052 = vpow.pop %v1051
        %v1053 = vmul.f32 %v1029, 1.442695
        %v1054 = vpow.pop %v1053
        %v1055 = vmul.f32 %v1030, 1.442695
        %v1056 = vpow.pop %v1055
        %v1057 = vmul.f32 %v1031, 1.442695
        %v1058 = vpow.pop %v1057
        %v1059 = vmul.f32 %v1032, 1.442695
        %v1060 = vpow.pop %v1059
        %v1061 = vmul.f32 %v1033, 1.442695
        %v1062 = vpow.pop %v1061
        %v1063 = vmul.f32 %v1034, 1.442695
        %v1064 = vpow.pop %v1063
        %v1065 = vmul.f32 %v1035, 1.442695
        %v1066 = vpow.pop %v1065
        %v1067 = vmul.f32 %v1036, 1.442695
        %v1068 = vpow.pop %v1067
        %1085 = vset.pattern.permute.xlu0 0
        %1086 = vperm.xlu0 %1085, %v1038
        %v1087 = vpop.permute.xlu0 %1086
        %1088 = vset.pattern.permute.xlu0 0
        %1089 = vperm.xlu0 %1088, %v1040
        %v1090 = vpop.permute.xlu0 %1089
        %1091 = vset.pattern.permute.xlu0 0
        %1092 = vperm.xlu0 %1091, %v1042
        %v1093 = vpop.permute.xlu0 %1092
        %1094 = vset.pattern.permute.xlu0 0
        %1095 = vperm.xlu0 %1094, %v1044
        %v1096 = vpop.permute.xlu0 %1095
        %1097 = vset.pattern.permute.xlu0 0
        %1098 = vperm.xlu0 %1097, %v1046
        %v1099 = vpop.permute.xlu0 %1098
        %1100 = vset.pattern.permute.xlu0 0
        %1101 = vperm.xlu0 %1100, %v1048
        %v1102 = vpop.permute.xlu0 %1101
        %1103 = vset.pattern.permute.xlu0 0
        %1104 = vperm.xlu0 %1103, %v1050
        %v1105 = vpop.permute.xlu0 %1104
        %1106 = vset.pattern.permute.xlu0 0
        %1107 = vperm.xlu0 %1106, %v1052
        %v1108 = vpop.permute.xlu0 %1107
        %1109 = vset.pattern.permute.xlu0 0
        %1110 = vperm.xlu0 %1109, %v1054
        %v1111 = vpop.permute.xlu0 %1110
        %1112 = vset.pattern.permute.xlu0 0
        %1113 = vperm.xlu0 %1112, %v1056
        %v1114 = vpop.permute.xlu0 %1113
        %1115 = vset.pattern.permute.xlu0 0
        %1116 = vperm.xlu0 %1115, %v1058
        %v1117 = vpop.permute.xlu0 %1116
        %1118 = vset.pattern.permute.xlu0 0
        %1119 = vperm.xlu0 %1118, %v1060
        %v1120 = vpop.permute.xlu0 %1119
        %1121 = vset.pattern.permute.xlu0 0
        %1122 = vperm.xlu0 %1121, %v1062
        %v1123 = vpop.permute.xlu0 %1122
        %1124 = vset.pattern.permute.xlu0 0
        %1125 = vperm.xlu0 %1124, %v1064
        %v1126 = vpop.permute.xlu0 %1125
        %1127 = vset.pattern.permute.xlu0 0
        %1128 = vperm.xlu0 %1127, %v1066
        %v1129 = vpop.permute.xlu0 %1128
        %1130 = vset.pattern.permute.xlu0 0
        %1131 = vperm.xlu0 %1130, %v1068
        %v1132 = vpop.permute.xlu0 %1131
        %v1133 = vlaneseq
        %v1134 = vshrl.u32 %v1133, 7
        %v1135 = vsub.s32 %v886, %v1134
        %v1136 = vrot.slane %v1087, %v1135
        %v1137 = vlaneseq
        %v1138 = vshrl.u32 %v1137, 7
        %v1139 = vsub.s32 %v891, %v1138
        %v1140 = vrot.slane %v1090, %v1139
        %v1141 = vsel %vm896, %v1140, %v1136
        %v1142 = vlaneseq
        %v1143 = vshrl.u32 %v1142, 7
        %v1144 = vsub.s32 %v886, %v1143
        %v1145 = vrot.slane %v1093, %v1144
        %v1146 = vlaneseq
        %v1147 = vshrl.u32 %v1146, 7
        %v1148 = vsub.s32 %v891, %v1147
        %v1149 = vrot.slane %v1096, %v1148
        %v1150 = vsel %vm896, %v1149, %v1145
        %v1151 = vlaneseq
        %v1152 = vshrl.u32 %v1151, 7
        %v1153 = vsub.s32 %v886, %v1152
        %v1154 = vrot.slane %v1099, %v1153
        %v1155 = vlaneseq
        %v1156 = vshrl.u32 %v1155, 7
        %v1157 = vsub.s32 %v891, %v1156
        %v1158 = vrot.slane %v1102, %v1157
        %v1159 = vsel %vm896, %v1158, %v1154
        %v1160 = vlaneseq
        %v1161 = vshrl.u32 %v1160, 7
        %v1162 = vsub.s32 %v886, %v1161
        %v1163 = vrot.slane %v1105, %v1162
        %v1164 = vlaneseq
        %v1165 = vshrl.u32 %v1164, 7
        %v1166 = vsub.s32 %v891, %v1165
        %v1167 = vrot.slane %v1108, %v1166
        %v1168 = vsel %vm896, %v1167, %v1163
        %v1169 = vlaneseq
        %v1170 = vshrl.u32 %v1169, 7
        %v1171 = vsub.s32 %v886, %v1170
        %v1172 = vrot.slane %v1111, %v1171
        %v1173 = vlaneseq
        %v1174 = vshrl.u32 %v1173, 7
        %v1175 = vsub.s32 %v891, %v1174
        %v1176 = vrot.slane %v1114, %v1175
        %v1177 = vsel %vm896, %v1176, %v1172
        %v1178 = vlaneseq
        %v1179 = vshrl.u32 %v1178, 7
        %v1180 = vsub.s32 %v886, %v1179
        %v1181 = vrot.slane %v1117, %v1180
        %v1182 = vlaneseq
        %v1183 = vshrl.u32 %v1182, 7
        %v1184 = vsub.s32 %v891, %v1183
        %v1185 = vrot.slane %v1120, %v1184
        %v1186 = vsel %vm896, %v1185, %v1181
        %v1187 = vlaneseq
        %v1188 = vshrl.u32 %v1187, 7
        %v1189 = vsub.s32 %v886, %v1188
        %v1190 = vrot.slane %v1123, %v1189
        %v1191 = vlaneseq
        %v1192 = vshrl.u32 %v1191, 7
        %v1193 = vsub.s32 %v891, %v1192
        %v1194 = vrot.slane %v1126, %v1193
        %v1195 = vsel %vm896, %v1194, %v1190
        %v1196 = vlaneseq
        %v1197 = vshrl.u32 %v1196, 7
        %v1198 = vsub.s32 %v886, %v1197
        %v1199 = vrot.slane %v1129, %v1198
        %v1200 = vlaneseq
        %v1201 = vshrl.u32 %v1200, 7
        %v1202 = vsub.s32 %v891, %v1201
        %v1203 = vrot.slane %v1132, %v1202
        %v1204 = vsel %vm896, %v1203, %v1199
        %v1205 = vsel %vm961, %v1150, %v1141
        %v1206 = vsel %vm963, %v1159, %v1205
        %v1207 = vsel %vm965, %v1168, %v1206
        %v1208 = vsel %vm967, %v1177, %v1207
        %v1209 = vsel %vm969, %v1186, %v1208
        %v1210 = vsel %vm971, %v1195, %v1209
        %v1211 = vsel %vm973, %v1204, %v1210
        %v1213 = vsel %vm976, %v1211, 0.0
        %1214 = vadd.xlane.f32.xlu0 %v1213
        %v1215 = vpop.xlane.xlu0 %1214
        %v1216 = vrcp.pop %v1215
        %v1218 = vlaneseq
        %v1219 = vshrl.u32 %v1218, 7
        %v1220 = vsub.s32 0, %v1219
        %v1221 = vrot.slane %v1216, %v1220
        %v1222 = vlaneseq
        %v1223 = vshrl.u32 %v1222, 7
        %v1224 = vsub.s32 1, %v1223
        %v1225 = vrot.slane %v1216, %v1224
        %v1226 = vlaneseq
        %v1227 = vshrl.u32 %v1226, 7
        %v1228 = vsub.s32 2, %v1227
        %v1229 = vrot.slane %v1216, %v1228
        %v1230 = vlaneseq
        %v1231 = vshrl.u32 %v1230, 7
        %v1232 = vsub.s32 3, %v1231
        %v1233 = vrot.slane %v1216, %v1232
        %v1234 = vlaneseq
        %v1235 = vshrl.u32 %v1234, 7
        %v1236 = vsub.s32 4, %v1235
        %v1237 = vrot.slane %v1216, %v1236
        %v1238 = vlaneseq
        %v1239 = vshrl.u32 %v1238, 7
        %v1240 = vsub.s32 5, %v1239
        %v1241 = vrot.slane %v1216, %v1240
        %v1242 = vlaneseq
        %v1243 = vshrl.u32 %v1242, 7
        %v1244 = vsub.s32 6, %v1243
        %v1245 = vrot.slane %v1216, %v1244
        %v1246 = vlaneseq
        %v1247 = vshrl.u32 %v1246, 7
        %v1248 = vsub.s32 7, %v1247
        %v1249 = vrot.slane %v1216, %v1248
        %v1258 = vmul.f32 %v1038, %v1221
        %v1259 = vmul.f32 %v1040, %v1221
        %v1260 = vmul.f32 %v1042, %v1225
        %v1261 = vmul.f32 %v1044, %v1225
        %v1262 = vmul.f32 %v1046, %v1229
        %v1263 = vmul.f32 %v1048, %v1229
        %v1264 = vmul.f32 %v1050, %v1233
        %v1265 = vmul.f32 %v1052, %v1233
        %v1266 = vmul.f32 %v1054, %v1237
        %v1267 = vmul.f32 %v1056, %v1237
        %v1268 = vmul.f32 %v1058, %v1241
        %v1269 = vmul.f32 %v1060, %v1241
        %v1270 = vmul.f32 %v1062, %v1245
        %v1271 = vmul.f32 %v1064, %v1245
        %v1272 = vmul.f32 %v1066, %v1249
        %v1273 = vmul.f32 %v1068, %v1249
        %1275 = vset.pattern.permute.xlu0 0
        %1276 = vperm.xlu0 %1275, %v1258
        %v1277 = vpop.permute.xlu0 %1276
        %1280 = vset.pattern.permute.xlu0 0
        %1281 = vperm.xlu0 %1280, %v1259
        %v1282 = vpop.permute.xlu0 %1281
        %1285 = vset.pattern.permute.xlu0 0
        %1286 = vperm.xlu0 %1285, %v1260
        %v1287 = vpop.permute.xlu0 %1286
        %1290 = vset.pattern.permute.xlu0 0
        %1291 = vperm.xlu0 %1290, %v1261
        %v1292 = vpop.permute.xlu0 %1291
        %1295 = vset.pattern.permute.xlu0 0
        %1296 = vperm.xlu0 %1295, %v1262
        %v1297 = vpop.permute.xlu0 %1296
        %1300 = vset.pattern.permute.xlu0 0
        %1301 = vperm.xlu0 %1300, %v1263
        %v1302 = vpop.permute.xlu0 %1301
        %1305 = vset.pattern.permute.xlu0 0
        %1306 = vperm.xlu0 %1305, %v1264
        %v1307 = vpop.permute.xlu0 %1306
        %1310 = vset.pattern.permute.xlu0 0
        %1311 = vperm.xlu0 %1310, %v1265
        %v1312 = vpop.permute.xlu0 %1311
        %1315 = vset.pattern.permute.xlu0 0
        %1316 = vperm.xlu0 %1315, %v1266
        %v1317 = vpop.permute.xlu0 %1316
        %1320 = vset.pattern.permute.xlu0 0
        %1321 = vperm.xlu0 %1320, %v1267
        %v1322 = vpop.permute.xlu0 %1321
        %1325 = vset.pattern.permute.xlu0 0
        %1326 = vperm.xlu0 %1325, %v1268
        %v1327 = vpop.permute.xlu0 %1326
        %1330 = vset.pattern.permute.xlu0 0
        %1331 = vperm.xlu0 %1330, %v1269
        %v1332 = vpop.permute.xlu0 %1331
        %1335 = vset.pattern.permute.xlu0 0
        %1336 = vperm.xlu0 %1335, %v1270
        %v1337 = vpop.permute.xlu0 %1336
        %1340 = vset.pattern.permute.xlu0 0
        %1341 = vperm.xlu0 %1340, %v1271
        %v1342 = vpop.permute.xlu0 %1341
        %1345 = vset.pattern.permute.xlu0 0
        %1346 = vperm.xlu0 %1345, %v1272
        %v1347 = vpop.permute.xlu0 %1346
        %1350 = vset.pattern.permute.xlu0 0
        %1351 = vperm.xlu0 %1350, %v1273
        %v1352 = vpop.permute.xlu0 %1351
        %v1354 = vmul.f32 %v376, %v1277
        %v1355 = vmul.f32 %v377, %v1282
        %v1356 = vmul.f32 %v378, %v1287
        %v1357 = vmul.f32 %v379, %v1292
        %v1358 = vmul.f32 %v380, %v1297
        %v1359 = vmul.f32 %v381, %v1302
        %v1360 = vmul.f32 %v382, %v1307
        %v1361 = vmul.f32 %v383, %v1312
        %v1362 = vmul.f32 %v384, %v1317
        %v1363 = vmul.f32 %v385, %v1322
        %v1364 = vmul.f32 %v386, %v1327
        %v1365 = vmul.f32 %v387, %v1332
        %v1366 = vmul.f32 %v388, %v1337
        %v1367 = vmul.f32 %v389, %v1342
        %v1368 = vmul.f32 %v390, %v1347
        %v1369 = vmul.f32 %v391, %v1352
        %v1370 = vsel %vm396, %v1354, 0.0
        %v1371 = vsel %vm396, %v1355, 0.0
        %v1372 = vadd.f32 %v1370, %v1371
        %v1373 = vrot.slane %v1372, 4
        %v1374 = vadd.f32 %v1372, %v1373
        %v1375 = vrot.slane %v1374, 2
        %v1376 = vadd.f32 %v1374, %v1375
        %v1377 = vrot.slane %v1376, 1
        %v1378 = vadd.f32 %v1376, %v1377
        %v1379 = vsel %vm396, %v1356, 0.0
        %v1380 = vsel %vm396, %v1357, 0.0
        %v1381 = vadd.f32 %v1379, %v1380
        %v1382 = vrot.slane %v1381, 4
        %v1383 = vadd.f32 %v1381, %v1382
        %v1384 = vrot.slane %v1383, 2
        %v1385 = vadd.f32 %v1383, %v1384
        %v1386 = vrot.slane %v1385, 1
        %v1387 = vadd.f32 %v1385, %v1386
        %v1388 = vsel %vm396, %v1358, 0.0
        %v1389 = vsel %vm396, %v1359, 0.0
        %v1390 = vadd.f32 %v1388, %v1389
        %v1391 = vrot.slane %v1390, 4
        %v1392 = vadd.f32 %v1390, %v1391
        %v1393 = vrot.slane %v1392, 2
        %v1394 = vadd.f32 %v1392, %v1393
        %v1395 = vrot.slane %v1394, 1
        %v1396 = vadd.f32 %v1394, %v1395
        %v1397 = vsel %vm396, %v1360, 0.0
        %v1398 = vsel %vm396, %v1361, 0.0
        %v1399 = vadd.f32 %v1397, %v1398
        %v1400 = vrot.slane %v1399, 4
        %v1401 = vadd.f32 %v1399, %v1400
        %v1402 = vrot.slane %v1401, 2
        %v1403 = vadd.f32 %v1401, %v1402
        %v1404 = vrot.slane %v1403, 1
        %v1405 = vadd.f32 %v1403, %v1404
        %v1406 = vsel %vm396, %v1362, 0.0
        %v1407 = vsel %vm396, %v1363, 0.0
        %v1408 = vadd.f32 %v1406, %v1407
        %v1409 = vrot.slane %v1408, 4
        %v1410 = vadd.f32 %v1408, %v1409
        %v1411 = vrot.slane %v1410, 2
        %v1412 = vadd.f32 %v1410, %v1411
        %v1413 = vrot.slane %v1412, 1
        %v1414 = vadd.f32 %v1412, %v1413
        %v1415 = vsel %vm396, %v1364, 0.0
        %v1416 = vsel %vm396, %v1365, 0.0
        %v1417 = vadd.f32 %v1415, %v1416
        %v1418 = vrot.slane %v1417, 4
        %v1419 = vadd.f32 %v1417, %v1418
        %v1420 = vrot.slane %v1419, 2
        %v1421 = vadd.f32 %v1419, %v1420
        %v1422 = vrot.slane %v1421, 1
        %v1423 = vadd.f32 %v1421, %v1422
        %v1424 = vsel %vm396, %v1366, 0.0
        %v1425 = vsel %vm396, %v1367, 0.0
        %v1426 = vadd.f32 %v1424, %v1425
        %v1427 = vrot.slane %v1426, 4
        %v1428 = vadd.f32 %v1426, %v1427
        %v1429 = vrot.slane %v1428, 2
        %v1430 = vadd.f32 %v1428, %v1429
        %v1431 = vrot.slane %v1430, 1
        %v1432 = vadd.f32 %v1430, %v1431
        %v1433 = vsel %vm396, %v1368, 0.0
        %v1434 = vsel %vm396, %v1369, 0.0
        %v1435 = vadd.f32 %v1433, %v1434
        %v1436 = vrot.slane %v1435, 4
        %v1437 = vadd.f32 %v1435, %v1436
        %v1438 = vrot.slane %v1437, 2
        %v1439 = vadd.f32 %v1437, %v1438
        %v1440 = vrot.slane %v1439, 1
        %v1441 = vadd.f32 %v1439, %v1440
        %v1450 = vsel %vm961, %v1387, %v1378
        %v1451 = vsel %vm963, %v1396, %v1450
        %v1452 = vsel %vm965, %v1405, %v1451
        %v1453 = vsel %vm967, %v1414, %v1452
        %v1454 = vsel %vm969, %v1423, %v1453
        %v1455 = vsel %vm971, %v1432, %v1454
        %v1456 = vsel %vm973, %v1441, %v1455
        %1458 = vst.msk [vmem:[%s367] sm:$0xff] %vm396, %v1456
        %v1459 = vlaneseq
        %v1460 = vshrl.u32 %v1459, 7
        %v1461 = vsub.s32 %v886, %v1460
        %v1462 = vrot.slane %v1277, %v1461
        %v1463 = vlaneseq
        %v1464 = vshrl.u32 %v1463, 7
        %v1465 = vsub.s32 %v891, %v1464
        %v1466 = vrot.slane %v1282, %v1465
        %v1467 = vsel %vm896, %v1466, %v1462
        %v1468 = vlaneseq
        %v1469 = vshrl.u32 %v1468, 7
        %v1470 = vsub.s32 %v886, %v1469
        %v1471 = vrot.slane %v1287, %v1470
        %v1472 = vlaneseq
        %v1473 = vshrl.u32 %v1472, 7
        %v1474 = vsub.s32 %v891, %v1473
        %v1475 = vrot.slane %v1292, %v1474
        %v1476 = vsel %vm896, %v1475, %v1471
        %v1477 = vlaneseq
        %v1478 = vshrl.u32 %v1477, 7
        %v1479 = vsub.s32 %v886, %v1478
        %v1480 = vrot.slane %v1297, %v1479
        %v1481 = vlaneseq
        %v1482 = vshrl.u32 %v1481, 7
        %v1483 = vsub.s32 %v891, %v1482
        %v1484 = vrot.slane %v1302, %v1483
        %v1485 = vsel %vm896, %v1484, %v1480
        %v1486 = vlaneseq
        %v1487 = vshrl.u32 %v1486, 7
        %v1488 = vsub.s32 %v886, %v1487
        %v1489 = vrot.slane %v1307, %v1488
        %v1490 = vlaneseq
        %v1491 = vshrl.u32 %v1490, 7
        %v1492 = vsub.s32 %v891, %v1491
        %v1493 = vrot.slane %v1312, %v1492
        %v1494 = vsel %vm896, %v1493, %v1489
        %v1495 = vlaneseq
        %v1496 = vshrl.u32 %v1495, 7
        %v1497 = vsub.s32 %v886, %v1496
        %v1498 = vrot.slane %v1317, %v1497
        %v1499 = vlaneseq
        %v1500 = vshrl.u32 %v1499, 7
        %v1501 = vsub.s32 %v891, %v1500
        %v1502 = vrot.slane %v1322, %v1501
        %v1503 = vsel %vm896, %v1502, %v1498
        %v1504 = vlaneseq
        %v1505 = vshrl.u32 %v1504, 7
        %v1506 = vsub.s32 %v886, %v1505
        %v1507 = vrot.slane %v1327, %v1506
        %v1508 = vlaneseq
        %v1509 = vshrl.u32 %v1508, 7
        %v1510 = vsub.s32 %v891, %v1509
        %v1511 = vrot.slane %v1332, %v1510
        %v1512 = vsel %vm896, %v1511, %v1507
        %v1513 = vlaneseq
        %v1514 = vshrl.u32 %v1513, 7
        %v1515 = vsub.s32 %v886, %v1514
        %v1516 = vrot.slane %v1337, %v1515
        %v1517 = vlaneseq
        %v1518 = vshrl.u32 %v1517, 7
        %v1519 = vsub.s32 %v891, %v1518
        %v1520 = vrot.slane %v1342, %v1519
        %v1521 = vsel %vm896, %v1520, %v1516
        %v1522 = vlaneseq
        %v1523 = vshrl.u32 %v1522, 7
        %v1524 = vsub.s32 %v886, %v1523
        %v1525 = vrot.slane %v1347, %v1524
        %v1526 = vlaneseq
        %v1527 = vshrl.u32 %v1526, 7
        %v1528 = vsub.s32 %v891, %v1527
        %v1529 = vrot.slane %v1352, %v1528
        %v1530 = vsel %vm896, %v1529, %v1525
        %v1531 = vsel %vm961, %v1476, %v1467
        %v1532 = vsel %vm963, %v1485, %v1531
        %v1533 = vsel %vm965, %v1494, %v1532
        %v1534 = vsel %vm967, %v1503, %v1533
        %v1535 = vsel %vm969, %v1512, %v1534
        %v1536 = vsel %vm971, %v1521, %v1535
        %v1537 = vsel %vm973, %v1530, %v1536
        %1539 = vst.msk [vmem:[%s374] sm:$0xff] %vm976, %v1537
        %s1540 = sand.u32 %s176, 1
        %s1541 = scalar_lea.sflag [#allocation4], %s1540
        %s1542 = sand.u32 %s176, 1
        %s1543 = smul.addr %s1542, 8
        %s1544 = scalar_lea.vmem [#allocation10], %s1543
        %s1545 = sand.u32 %s202, 1
        %s1546 = scalar_lea.sflag [#allocation12], %s1545
        %s1547 = sand.u32 %s202, 1
        %s1548 = smul.addr %s1547, 8
        %s1549 = scalar_lea.vmem [#allocation11], %s1548
        // Predicated region
        $region61: #{tpu_custom_call.1} parent=43 // pred_check
          %p1550 = pneg %p186
        $region62: #{tpu_custom_call.1} parent=43 // pred_check_branch
          %1552 = sbr.rel (%p1550) target = $region64
        $region63: #{tpu_custom_call.1} parent=43 // pred_region
          %s1554 = ssub.s32 128, 128
          %1555 = vsyncadd %s1541, %s1554
          %s1556 = smul.addr %s32, 128
          %s1557 = scalar_lea.hbm %s6, %s1556
          %s1559 = sshll.u32 %s1544, 4
          %s1560 = int_to_ptr.vmem [resolvable:$true] %s1559
          %1562 = dma.vmem_to_hbm [thread:$0]  %s1560, 128, %s1557, %s1541
        $region64: #{tpu_custom_call.1} parent=43 // pred_fallthru
          _
        // Predicated region
        $region65: #{tpu_custom_call.1} parent=43 // pred_check
          %p1563 = pneg %p212
        $region66: #{tpu_custom_call.1} parent=43 // pred_check_branch
          %1565 = sbr.rel (%p1563) target = $region68
        $region67: #{tpu_custom_call.1} parent=43 // pred_region
          %s1567 = ssub.s32 128, 128
          %1568 = vsyncadd %s1546, %s1567
          %s1569 = smul.addr %s32, 128
          %s1570 = scalar_lea.hbm %s7, %s1569
          %s1572 = sshll.u32 %s1549, 4
          %s1573 = int_to_ptr.vmem [resolvable:$true] %s1572
          %1575 = dma.vmem_to_hbm [thread:$0]  %s1573, 128, %s1570, %s1546
        $region68: #{tpu_custom_call.1} parent=43 // pred_fallthru
          _
      $region44: #{tpu_custom_call.1} parent=5 // pred_fallthru
        _
      %p1576 = scmp.le.s32.totalorder 2, %s27
      // Predicated region
      $region69: #{tpu_custom_call.1} parent=5 // pred_check
        %p1577 = pneg %p1576
      $region70: #{tpu_custom_call.1} parent=5 // pred_check_branch
        %1579 = sbr.rel (%p1577) target = $region72
      $region71: #{tpu_custom_call.1} parent=5 // pred_region
        %s1580 = ssub.s32 %s27, 2
        // Predicated region
        $region73: #{tpu_custom_call.1} parent=71 // pred_check
          %p1581 = pneg %p192
        $region74: #{tpu_custom_call.1} parent=71 // pred_check_branch
          %1583 = sbr.rel (%p1581) target = $region76
        $region75: #{tpu_custom_call.1} parent=71 // pred_region
          %s1584 = sand.u32 %s177, 1
          %s1585 = scalar_lea.sflag [#allocation4], %s1584
          %s1586 = sand.u32 %s177, 1
          %s1587 = smul.addr %s1586, 8
          %s1588 = scalar_lea.vmem [#allocation10], %s1587
          %1589 = dma.done %s1585, 128
        $region76: #{tpu_custom_call.1} parent=71 // pred_fallthru
          _
        // Predicated region
        $region77: #{tpu_custom_call.1} parent=71 // pred_check
          %p1590 = pneg %p218
        $region78: #{tpu_custom_call.1} parent=71 // pred_check_branch
          %1592 = sbr.rel (%p1590) target = $region80
        $region79: #{tpu_custom_call.1} parent=71 // pred_region
          %s1593 = sand.u32 %s203, 1
          %s1594 = scalar_lea.sflag [#allocation12], %s1593
          %s1595 = sand.u32 %s203, 1
          %s1596 = smul.addr %s1595, 8
          %s1597 = scalar_lea.vmem [#allocation11], %s1596
          %1598 = dma.done %s1594, 128
        $region80: #{tpu_custom_call.1} parent=71 // pred_fallthru
          _
      $region72: #{tpu_custom_call.1} parent=5 // pred_fallthru
        _
    $region6: #{tpu_custom_call.1} parent=1 // loop_footer
      %s31 = sadd.s32 1, %s27
    $region7: #{tpu_custom_call.1} parent=1 // loop_footer_branch
      %26 = sbr.rel target = $region3
    $region8: #{tpu_custom_call.1} parent=1 // loop_exit
      _
    %1599 = vsyncpa [#allocation3], 1
    %s1600 = scalar_lea.sflag [#allocation3], 1
    %1601 = vsyncpa %s1600, 1
    %1602 = vsyncpa [#allocation6], 1
    %s1603 = scalar_lea.sflag [#allocation6], 1
    %1604 = vsyncpa %s1603, 1
    %1605 = vsyncpa [#allocation9], 1
    %1606 = vsyncpa [#allocation4], 1
    %s1607 = scalar_lea.sflag [#allocation4], 1
    %1608 = vsyncpa %s1607, 1
    %1609 = vsyncpa [#allocation12], 1
    %s1610 = scalar_lea.sflag [#allocation12], 1
    %1611 = vsyncpa %s1610, 1

</llo_original>
